<compile_context>
chip_gen: v6e
topology: v6e:2x2x1
jax: 0.10.0
libtpu: 0.0.40
codegen_flags: <defaults>
</compile_context>

<pallas_src>
from functools import partial

import jax
import jax.numpy as jnp
from jax.experimental import pallas as pl
from jax.experimental.pallas import tpu as pltpu

LANE = 128
_RESIDENT_WOUT_BYTES = 16 << 20   # keep the whole (H, V_pad) bf16 projection resident below this


def _vocab_tiling(voc_size, hidden_size):
    """Lane-dense vocab tile size and padded vocab size (multiple of the tile)."""
    v128 = -(-voc_size // LANE) * LANE
    if hidden_size * v128 * 2 <= _RESIDENT_WOUT_BYTES:
        tile_v = v128                       # single VMEM-resident tile: no per-step re-stream
    else:
        tile_v = min(2048, v128)            # few wide lane-dense tiles amortize grid overhead
    v_pad = -(-v128 // tile_v) * tile_v
    return tile_v, v_pad


def make_decoder_kernel(n_layers):
    """kernel(ids, embed, h0, c0, (w_cat, b)*L, wout, bout, logits, h, c, x_scr, h_top)."""

    def kernel(*refs):
        ids_ref = refs[0]                              # SMEM (T*B,) int32 (scalar prefetch)
        embed_ref, h0_ref, c0_ref = refs[1:4]          # VMEM
        layer_refs = refs[4:4 + 2 * n_layers]          # (w_cat, b) per layer
        wout_ref, bout_ref = refs[4 + 2 * n_layers:6 + 2 * n_layers]
        logits_ref, h_out_ref, c_out_ref = refs[6 + 2 * n_layers:9 + 2 * n_layers]
        x_scr = refs[9 + 2 * n_layers]                 # VMEM scratch (B, E) f32
        h_top = refs[10 + 2 * n_layers]                # VMEM scratch (B, H) bf16

        t = pl.program_id(0)                           # decode step
        j = pl.program_id(1)                           # vocab tile
        B = h0_ref.shape[1]
        H = h0_ref.shape[2]

        # h_out/c_out have constant index maps -> their VMEM blocks stay resident for the whole
        # grid and double as the running LSTM state (written back to HBM once at the end).
        @pl.when((t == 0) & (j == 0))
        def _init_state():
            h_out_ref[...] = h0_ref[...]
            c_out_ref[...] = c0_ref[...]

        @pl.when(j == 0)
        def _lstm_step():
            # Embedding lookup: B dynamic-row loads written straight into the (B, E) scratch.
            # TODO(synk): for large vocabularies keep the (V, E) table in HBM as bf16 and
            # DMA-gather the B rows per step (pltpu.make_async_copy), prefetching step t+1
            # behind the logits GEMM, instead of holding the table resident in VMEM.
            for b in range(B):
                tok = ids_ref[t * B + b]
                x_scr[pl.ds(b, 1), :] = embed_ref[pl.ds(tok, 1), :]

            x = x_scr[...]                                           # (B, E) f32
            for l in range(n_layers):
                w_ref = layer_refs[2 * l]                            # (in_l + H, 4H) bf16
                b_ref = layer_refs[2 * l + 1]                        # (1, 4H) f32
                h_prev = h_out_ref[l]                                # (B, H) f32
                c_prev = c_out_ref[l]
                # Fused [x, h] @ [W_ih; W_hh]: bf16 x bf16 on the native MXU path, f32 accumulate.
                xh = jnp.concatenate([x, h_prev], axis=-1).astype(jnp.bfloat16)
                gates = jnp.dot(xh, w_ref[...],
                                preferred_element_type=jnp.float32) + b_ref[...]
                if 4 * H <= LANE:
                    # 4H fits one vreg row: one sigmoid + one tanh on the whole tile.
                    sig = jax.nn.sigmoid(gates)
                    tnh = jnp.tanh(gates)
                    i_g = sig[:, 0 * H:1 * H]
                    f_g = sig[:, 1 * H:2 * H]
                    g_g = tnh[:, 2 * H:3 * H]
                    o_g = sig[:, 3 * H:4 * H]
                else:
                    # Wide hidden: slice first so the single EUP does 4H (not 8H) lanes.
                    i_g = jax.nn.sigmoid(gates[:, 0 * H:1 * H])
                    f_g = jax.nn.sigmoid(gates[:, 1 * H:2 * H])
                    g_g = jnp.tanh(gates[:, 2 * H:3 * H])
                    o_g = jax.nn.sigmoid(gates[:, 3 * H:4 * H])
                c_new = f_g * c_prev + i_g * g_g
                h_new = o_g * jnp.tanh(c_new)
                h_out_ref[l] = h_new
                c_out_ref[l] = c_new
                x = h_new
            h_top[...] = x.astype(jnp.bfloat16)                      # MXU-ready for vocab proj

        # Every (t, j): lane-dense bf16 x bf16 logits tile for this decode step.
        # TODO(synk): on v7x split this vocab-tile axis across the 2 TensorCores
        # (core-parallel axis with per-core LSTM recompute or h_top via VMEM_SHARED).
        logits_ref[...] = (jnp.dot(h_top[...], wout_ref[...],
                                   preferred_element_type=jnp.float32)
                           + bout_ref[...])

    return kernel


def _nbytes(x):
    return int(x.size) * x.dtype.itemsize


def _vmem_limit_bytes(resident_bytes):
    """Per-generation VMEM budget: needed bytes + headroom, capped below physical VMEM
    (64 MiB on v7x, 128 MiB on v5e/v6e)."""
    try:
        cap = pltpu.get_tpu_info().vmem_capacity_bytes
    except Exception:
        cap = 64 << 20
    want = 2 * int(resident_bytes) + (8 << 20)
    return int(min(max(want, 32 << 20), (int(cap) * 3) // 4))


@partial(jax.jit, static_argnames=("single_buffer",))
def _decode_impl(ids_flat, h0, c0, kp, *, single_buffer=True):
    L, B, H = h0.shape
    T = ids_flat.shape[0] // B
    V, E = kp["embed"].shape
    V_pad = kp["wout"].shape[1]
    TILE_V, _ = _vocab_tiling(V, H)
    n_v_tiles = V_pad // TILE_V

    operands = [kp["embed"], h0, c0]
    for l in range(L):
        operands += [kp[f"w_{l}"], kp[f"b_{l}"]]
    operands += [kp["wout"], kp["bout"]]

    whole2 = lambda t, j, ids_ref: (0, 0)
    whole3 = lambda t, j, ids_ref: (0, 0, 0)
    vtile2 = lambda t, j, ids_ref: (0, j)

    def spec(shape, index_map, *, constant):
        # Constant-index-map operands stay resident across the grid: skip double buffering.
        if single_buffer and constant:
            return pl.BlockSpec(shape, index_map, pipeline_mode=pl.Buffered(1))
        return pl.BlockSpec(shape, index_map)

    in_specs = [
        spec((V, E), whole2, constant=True),             # embedding table (resident f32)
        spec((L, B, H), whole3, constant=True),          # h0
        spec((L, B, H), whole3, constant=True),          # c0
    ]
    for l in range(L):
        in_dim = (E if l == 0 else H) + H
        in_specs += [spec((in_dim, 4 * H), whole2, constant=True),   # fused [W_ih; W_hh] bf16
                     spec((1, 4 * H), whole2, constant=True)]        # folded bias f32
    wout_const = n_v_tiles == 1
    in_specs += [spec((H, TILE_V), vtile2, constant=wout_const),     # output proj tile bf16
                 spec((1, TILE_V), vtile2, constant=wout_const)]     # output bias tile f32

    out_specs = (
        pl.BlockSpec((None, B, TILE_V), lambda t, j, ids_ref: (t, 0, j)),  # logits (lane-dense)
        pl.BlockSpec((L, B, H), whole3),                                   # h (VMEM-resident)
        pl.BlockSpec((L, B, H), whole3),                                   # c (VMEM-resident)
    )

    grid_spec = pltpu.PrefetchScalarGridSpec(
        num_scalar_prefetch=1,                   # flat (T*B,) token ids -> SMEM
        grid=(T, n_v_tiles),
        in_specs=in_specs,
        out_specs=out_specs,
        scratch_shapes=[pltpu.VMEM((B, E), jnp.float32),     # gathered embedding rows
                        pltpu.VMEM((B, H), jnp.bfloat16)],   # top-layer h (bf16, MXU-ready)
    )

    # VMEM budget estimate: resident constants (+double-buffer if fallback), streamed wout/bout
    # tiles, output blocks, scratch.
    const_bytes = sum(_nbytes(a) for a in operands)
    stream_bytes = 2 * (H * TILE_V * 2 + TILE_V * 4)
    out_bytes = 2 * (B * TILE_V * 4) + 4 * _nbytes(h0)
    scratch_bytes = B * E * 4 + B * H * 2
    resident = ((1 if single_buffer else 2) * const_bytes
                + stream_bytes + out_bytes + scratch_bytes)

    logits_pad, h_out, c_out = pl.pallas_call(
        make_decoder_kernel(L),
        grid_spec=grid_spec,
        out_shape=(
            jax.ShapeDtypeStruct((T, B, V_pad), jnp.float32),
            jax.ShapeDtypeStruct((L, B, H), jnp.float32),
            jax.ShapeDtypeStruct((L, B, H), jnp.float32),
        ),
        # h0 -> h and c0 -> c reuse the same HBM buffers when driven by an outer decode loop.
        # Operand indices include the scalar-prefetch arg: ids=0, embed=1, h0=2, c0=3.
        input_output_aliases={2: 1, 3: 2},
        compiler_params=pltpu.CompilerParams(
            # Both axes carry state across iterations (h/c over t, h_top over j).
            dimension_semantics=("arbitrary", "arbitrary"),
            vmem_limit_bytes=_vmem_limit_bytes(resident),
        ),
    )(ids_flat, *operands)
    return logits_pad, h_out, c_out


def decoder_rnn_decode(token_ids_tb, h0, c0, kp):
    """Run T decode steps inside one pallas_call. token_ids_tb: (T, B) int32.
    Returns logits (T, B, V) f32 and new (h, c)."""
    V = kp["embed"].shape[0]
    # Clamp ids: TPU VMEM loads are not bounds-checked; an OOB id would silently read garbage.
    ids = jnp.clip(token_ids_tb.astype(jnp.int32), 0, V - 1).reshape(-1)
    try:
        logits_pad, h_out, c_out = _decode_impl(ids, h0, c0, kp, single_buffer=True)
    except Exception:
        # pl.Buffered(1) pipeline_mode rejected by this jax/libtpu: identical semantics with
        # the default double-buffered pipeline (just ~2x resident-weight VMEM).
        logits_pad, h_out, c_out = _decode_impl(ids, h0, c0, kp, single_buffer=False)
    return logits_pad[:, :, :V], (h_out, c_out)


def decoder_rnn_forward(token_ids, h0, c0, kp):
    """DecoderRNN.forward: one decode step. token_ids (B,) -> logits (B, V), new (h, c)."""
    logits_seq, hc = decoder_rnn_decode(token_ids[None, :], h0, c0, kp)
    return logits_seq[0], hc


def init_torch_params(key, voc_size, embed_size, hidden_size, n_layers=3):
    """PyTorch-layout f32 parameters (nn.Embedding / nn.LSTM / nn.Linear style)."""
    k = hidden_size ** -0.5
    keys = jax.random.split(key, 3 + 4 * n_layers)
    p = {"embed": jax.random.normal(keys[0], (voc_size, embed_size), jnp.float32)}
    for l in range(n_layers):
        in_sz = embed_size if l == 0 else hidden_size
        kw = keys[1 + 4 * l: 5 + 4 * l]
        p[f"w_ih_{l}"] = jax.random.uniform(kw[0], (4 * hidden_size, in_sz), jnp.float32, -k, k)
        p[f"w_hh_{l}"] = jax.random.uniform(kw[1], (4 * hidden_size, hidden_size), jnp.float32, -k, k)
        p[f"b_ih_{l}"] = jax.random.uniform(kw[2], (4 * hidden_size,), jnp.float32, -k, k)
        p[f"b_hh_{l}"] = jax.random.uniform(kw[3], (4 * hidden_size,), jnp.float32, -k, k)
    p["w_out"] = jax.random.uniform(keys[-2], (voc_size, hidden_size), jnp.float32, -k, k)
    p["b_out"] = jax.random.uniform(keys[-1], (voc_size,), jnp.float32, -k, k)
    return p


def pack_params(tp, n_layers):
    """Kernel layout: fused+transposed LSTM weights (bf16), folded biases (f32),
    lane-dense zero-padded output projection (bf16), f32 embedding table."""
    V, hidden = tp["w_out"].shape
    _, v_pad = _vocab_tiling(V, hidden)
    kp = {"embed": tp["embed"].astype(jnp.float32)}
    for l in range(n_layers):
        w_cat = jnp.concatenate([tp[f"w_ih_{l}"].T, tp[f"w_hh_{l}"].T], axis=0)   # (in_l+H, 4H)
        kp[f"w_{l}"] = w_cat.astype(jnp.bfloat16)
        kp[f"b_{l}"] = (tp[f"b_ih_{l}"] + tp[f"b_hh_{l}"]).reshape(1, -1).astype(jnp.float32)
    kp["wout"] = jnp.pad(tp["w_out"].T, ((0, 0), (0, v_pad - V))).astype(jnp.bfloat16)
    kp["bout"] = jnp.pad(tp["b_out"], (0, v_pad - V)).reshape(1, v_pad).astype(jnp.float32)
    return kp


def reference_decode(token_ids_tb, h0, c0, kp, voc_size):
    """Pure-JAX reference mirroring the kernel's dtype path (bf16 weights & activations on
    the MXU, f32 accumulation and f32 element-wise gate math)."""
    T, _ = token_ids_tb.shape
    L, _, H = h0.shape
    h, c = h0, c0
    logits = []
    for t in range(T):
        x = kp["embed"][token_ids_tb[t]].astype(jnp.float32)
        h_l, c_l = [], []
        for l in range(L):
            xh = jnp.concatenate([x, h[l]], axis=-1).astype(jnp.bfloat16)
            gates = jnp.dot(xh, kp[f"w_{l}"], preferred_element_type=jnp.float32) + kp[f"b_{l}"]
            i = jax.nn.sigmoid(gates[:, 0 * H:1 * H])
            f = jax.nn.sigmoid(gates[:, 1 * H:2 * H])
            g = jnp.tanh(gates[:, 2 * H:3 * H])
            o = jax.nn.sigmoid(gates[:, 3 * H:4 * H])
            cl = f * c[l] + i * g
            hl = o * jnp.tanh(cl)
            h_l.append(hl)
            c_l.append(cl)
            x = hl
        h, c = jnp.stack(h_l), jnp.stack(c_l)
        lg = jnp.dot(x.astype(jnp.bfloat16), kp["wout"],
                     preferred_element_type=jnp.float32) + kp["bout"]
        logits.append(lg[:, :voc_size])
    return jnp.stack(logits), (h, c)


if __name__ == "__main__":
    VOC, EMBED, HIDDEN, LAYERS, BATCH, STEPS = 64, 16, 32, 3, 8, 4

    key = jax.random.PRNGKey(0)
    k_par, k_ids, k_h, k_c = jax.random.split(key, 4)
    torch_params = init_torch_params(k_par, VOC, EMBED, HIDDEN, LAYERS)
    kparams = pack_params(torch_params, LAYERS)
    h0 = jax.random.normal(k_h, (LAYERS, BATCH, HIDDEN), jnp.float32)
    c0 = jax.random.normal(k_c, (LAYERS, BATCH, HIDDEN), jnp.float32)

    # --- single decode step: exact DecoderRNN.forward semantics ---
    token_ids = jax.random.randint(k_ids, (BATCH,), 0, VOC, dtype=jnp.int32)
    logits, (h1, c1) = decoder_rnn_forward(token_ids, h0, c0, kparams)
    jax.block_until_ready((logits, h1, c1))

    ref_logits, (ref_h, ref_c) = reference_decode(token_ids[None, :], h0, c0, kparams, VOC)
    assert jnp.allclose(logits, ref_logits[0], atol=2e-3, rtol=2e-3)
    assert jnp.allclose(h1, ref_h, atol=2e-3, rtol=2e-3)
    assert jnp.allclose(c1, ref_c, atol=2e-3, rtol=2e-3)

    # --- multi-step decode: T steps in one kernel launch, weights/state VMEM-resident ---
    token_seq = jax.random.randint(k_ids, (STEPS, BATCH), 0, VOC, dtype=jnp.int32)
    logits_seq, (hT, cT) = decoder_rnn_decode(token_seq, h0, c0, kparams)
    jax.block_until_ready((logits_seq, hT, cT))

    ref_seq, (ref_hT, ref_cT) = reference_decode(token_seq, h0, c0, kparams, VOC)
    assert jnp.allclose(logits_seq, ref_seq, atol=5e-3, rtol=5e-3)
    assert jnp.allclose(hT, ref_hT, atol=5e-3, rtol=5e-3)
    assert jnp.allclose(cT, ref_cT, atol=5e-3, rtol=5e-3)

    print("KERNEL_OK")
</pallas_src>

<mosaic_0001>
module attributes {stable_mosaic.version = 11 : i64} {
  func.func @kernel(%arg0: i32, %arg1: i32, %arg2: memref<8xi32, #tpu.memory_space<smem>>, %arg3: memref<64x16xf32, #tpu.memory_space<vmem>>, %arg4: memref<3x8x32xf32, #tpu.memory_space<vmem>>, %arg5: memref<3x8x32xf32, #tpu.memory_space<vmem>>, %arg6: memref<48x128xbf16, #tpu.memory_space<vmem>>, %arg7: memref<1x128xf32, #tpu.memory_space<vmem>>, %arg8: memref<64x128xbf16, #tpu.memory_space<vmem>>, %arg9: memref<1x128xf32, #tpu.memory_space<vmem>>, %arg10: memref<64x128xbf16, #tpu.memory_space<vmem>>, %arg11: memref<1x128xf32, #tpu.memory_space<vmem>>, %arg12: memref<32x128xbf16, #tpu.memory_space<vmem>>, %arg13: memref<1x128xf32, #tpu.memory_space<vmem>>, %arg14: memref<1x8x128xf32, #tpu.memory_space<vmem>>, %arg15: memref<3x8x32xf32, #tpu.memory_space<vmem>>, %arg16: memref<3x8x32xf32, #tpu.memory_space<vmem>>, %arg17: memref<8x16xf32, #tpu.memory_space<vmem>>, %arg18: memref<8x32xbf16, #tpu.memory_space<vmem>>) attributes {dimension_semantics = [#tpu.dimension_semantics<arbitrary>, #tpu.dimension_semantics<arbitrary>], iteration_bounds = array<i64: 1, 1>, scalar_prefetch = 1 : i64, scratch_operands = 2 : i64, tpu.core_type = #tpu.core_type<tc>, window_params = [{pipeline_mode = #tpu.pipeline_mode<synchronous>, transform_indices = @transform_0, window_bounds = array<i64: 64, 16>}, {pipeline_mode = #tpu.pipeline_mode<synchronous>, transform_indices = @transform_1, window_bounds = array<i64: 3, 8, 32>}, {pipeline_mode = #tpu.pipeline_mode<synchronous>, transform_indices = @transform_2, window_bounds = array<i64: 3, 8, 32>}, {pipeline_mode = #tpu.pipeline_mode<synchronous>, transform_indices = @transform_3, window_bounds = array<i64: 48, 128>}, {pipeline_mode = #tpu.pipeline_mode<synchronous>, transform_indices = @transform_4, window_bounds = array<i64: 1, 128>}, {pipeline_mode = #tpu.pipeline_mode<synchronous>, transform_indices = @transform_5, window_bounds = array<i64: 64, 128>}, {pipeline_mode = #tpu.pipeline_mode<synchronous>, transform_indices = @transform_6, window_bounds = array<i64: 1, 128>}, {pipeline_mode = #tpu.pipeline_mode<synchronous>, transform_indices = @transform_7, window_bounds = array<i64: 64, 128>}, {pipeline_mode = #tpu.pipeline_mode<synchronous>, transform_indices = @transform_8, window_bounds = array<i64: 1, 128>}, {pipeline_mode = #tpu.pipeline_mode<synchronous>, transform_indices = @transform_9, window_bounds = array<i64: 32, 128>}, {pipeline_mode = #tpu.pipeline_mode<synchronous>, transform_indices = @transform_10, window_bounds = array<i64: 1, 128>}, {transform_indices = @transform_11, window_bounds = array<i64: 1, 8, 128>}, {pipeline_mode = #tpu.pipeline_mode<synchronous>, transform_indices = @transform_12, window_bounds = array<i64: 3, 8, 32>}, {pipeline_mode = #tpu.pipeline_mode<synchronous>, transform_indices = @transform_13, window_bounds = array<i64: 3, 8, 32>}]} {
    %c0_i32 = arith.constant 0 : i32
    %0 = arith.cmpi eq, %arg0, %c0_i32 : i32
    %c0_i32_0 = arith.constant 0 : i32
    %1 = arith.cmpi eq, %arg1, %c0_i32_0 : i32
    %2 = arith.andi %0, %1 : i1
    %3 = arith.extui %2 : i1 to i32
    %c0_i32_1 = arith.constant 0 : i32
    %4 = arith.cmpi ne, %3, %c0_i32_1 : i32
    scf.if %4 {
      %c0_12 = arith.constant 0 : index
      %c0_13 = arith.constant 0 : index
      %c0_14 = arith.constant 0 : index
      %17 = vector.load %arg4[%c0_12, %c0_13, %c0_14] : memref<3x8x32xf32, #tpu.memory_space<vmem>>, vector<3x8x32xf32>
      %c0_15 = arith.constant 0 : index
      %c0_16 = arith.constant 0 : index
      %c0_17 = arith.constant 0 : index
      %18 = vector.load %arg15[%c0_15, %c0_16, %c0_17] : memref<3x8x32xf32, #tpu.memory_space<vmem>>, vector<3x8x32xf32>
      tpu.vector_store %arg15[%c0_15, %c0_16, %c0_17], %17 {strides = array<i32>} : memref<3x8x32xf32, #tpu.memory_space<vmem>>, vector<3x8x32xf32>,
      %c0_18 = arith.constant 0 : index
      %c0_19 = arith.constant 0 : index
      %c0_20 = arith.constant 0 : index
      %19 = vector.load %arg5[%c0_18, %c0_19, %c0_20] : memref<3x8x32xf32, #tpu.memory_space<vmem>>, vector<3x8x32xf32>
      %c0_21 = arith.constant 0 : index
      %c0_22 = arith.constant 0 : index
      %c0_23 = arith.constant 0 : index
      %20 = vector.load %arg16[%c0_21, %c0_22, %c0_23] : memref<3x8x32xf32, #tpu.memory_space<vmem>>, vector<3x8x32xf32>
      tpu.vector_store %arg16[%c0_21, %c0_22, %c0_23], %19 {strides = array<i32>} : memref<3x8x32xf32, #tpu.memory_space<vmem>>, vector<3x8x32xf32>,
    } else {
    }
    %c0_i32_2 = arith.constant 0 : i32
    %5 = arith.cmpi eq, %arg1, %c0_i32_2 : i32
    %6 = arith.extui %5 : i1 to i32
    %c0_i32_3 = arith.constant 0 : i32
    %7 = arith.cmpi ne, %6, %c0_i32_3 : i32
    scf.if %7 {
      %c8_i32 = arith.constant 8 : i32
      %17 = arith.muli %arg0, %c8_i32 : i32
      %c0_i32_12 = arith.constant 0 : i32
      %18 = arith.addi %17, %c0_i32_12 : i32
      %19 = arith.index_cast %18 : i32 to index
      %20 = memref.load %arg2[%19] : memref<8xi32, #tpu.memory_space<smem>>
      %21 = arith.index_cast %20 : i32 to index
      %c0_13 = arith.constant 0 : index
      %22 = vector.load %arg3[%21, %c0_13] : memref<64x16xf32, #tpu.memory_space<vmem>>, vector<1x16xf32>
      %c0_14 = arith.constant 0 : index
      %c0_15 = arith.constant 0 : index
      %23 = vector.load %arg17[%c0_14, %c0_15] : memref<8x16xf32, #tpu.memory_space<vmem>>, vector<1x16xf32>
      tpu.vector_store %arg17[%c0_14, %c0_15], %22 {strides = array<i32>} : memref<8x16xf32, #tpu.memory_space<vmem>>, vector<1x16xf32>,
      %c8_i32_16 = arith.constant 8 : i32
      %24 = arith.muli %arg0, %c8_i32_16 : i32
      %c1_i32 = arith.constant 1 : i32
      %25 = arith.addi %24, %c1_i32 : i32
      %26 = arith.index_cast %25 : i32 to index
      %27 = memref.load %arg2[%26] : memref<8xi32, #tpu.memory_space<smem>>
      %28 = arith.index_cast %27 : i32 to index
      %c0_17 = arith.constant 0 : index
      %29 = vector.load %arg3[%28, %c0_17] : memref<64x16xf32, #tpu.memory_space<vmem>>, vector<1x16xf32>
      %c1 = arith.constant 1 : index
      %c0_18 = arith.constant 0 : index
      %30 = vector.load %arg17[%c1, %c0_18] : memref<8x16xf32, #tpu.memory_space<vmem>>, vector<1x16xf32>
      tpu.vector_store %arg17[%c1, %c0_18], %29 {strides = array<i32>} : memref<8x16xf32, #tpu.memory_space<vmem>>, vector<1x16xf32>,
      %c8_i32_19 = arith.constant 8 : i32
      %31 = arith.muli %arg0, %c8_i32_19 : i32
      %c2_i32 = arith.constant 2 : i32
      %32 = arith.addi %31, %c2_i32 : i32
      %33 = arith.index_cast %32 : i32 to index
      %34 = memref.load %arg2[%33] : memref<8xi32, #tpu.memory_space<smem>>
      %35 = arith.index_cast %34 : i32 to index
      %c0_20 = arith.constant 0 : index
      %36 = vector.load %arg3[%35, %c0_20] : memref<64x16xf32, #tpu.memory_space<vmem>>, vector<1x16xf32>
      %c2 = arith.constant 2 : index
      %c0_21 = arith.constant 0 : index
      %37 = vector.load %arg17[%c2, %c0_21] : memref<8x16xf32, #tpu.memory_space<vmem>>, vector<1x16xf32>
      tpu.vector_store %arg17[%c2, %c0_21], %36 {strides = array<i32>} : memref<8x16xf32, #tpu.memory_space<vmem>>, vector<1x16xf32>,
      %c8_i32_22 = arith.constant 8 : i32
      %38 = arith.muli %arg0, %c8_i32_22 : i32
      %c3_i32 = arith.constant 3 : i32
      %39 = arith.addi %38, %c3_i32 : i32
      %40 = arith.index_cast %39 : i32 to index
      %41 = memref.load %arg2[%40] : memref<8xi32, #tpu.memory_space<smem>>
      %42 = arith.index_cast %41 : i32 to index
      %c0_23 = arith.constant 0 : index
      %43 = vector.load %arg3[%42, %c0_23] : memref<64x16xf32, #tpu.memory_space<vmem>>, vector<1x16xf32>
      %c3 = arith.constant 3 : index
      %c0_24 = arith.constant 0 : index
      %44 = vector.load %arg17[%c3, %c0_24] : memref<8x16xf32, #tpu.memory_space<vmem>>, vector<1x16xf32>
      tpu.vector_store %arg17[%c3, %c0_24], %43 {strides = array<i32>} : memref<8x16xf32, #tpu.memory_space<vmem>>, vector<1x16xf32>,
      %c8_i32_25 = arith.constant 8 : i32
      %45 = arith.muli %arg0, %c8_i32_25 : i32
      %c4_i32 = arith.constant 4 : i32
      %46 = arith.addi %45, %c4_i32 : i32
      %47 = arith.index_cast %46 : i32 to index
      %48 = memref.load %arg2[%47] : memref<8xi32, #tpu.memory_space<smem>>
      %49 = arith.index_cast %48 : i32 to index
      %c0_26 = arith.constant 0 : index
      %50 = vector.load %arg3[%49, %c0_26] : memref<64x16xf32, #tpu.memory_space<vmem>>, vector<1x16xf32>
      %c4 = arith.constant 4 : index
      %c0_27 = arith.constant 0 : index
      %51 = vector.load %arg17[%c4, %c0_27] : memref<8x16xf32, #tpu.memory_space<vmem>>, vector<1x16xf32>
      tpu.vector_store %arg17[%c4, %c0_27], %50 {strides = array<i32>} : memref<8x16xf32, #tpu.memory_space<vmem>>, vector<1x16xf32>,
      %c8_i32_28 = arith.constant 8 : i32
      %52 = arith.muli %arg0, %c8_i32_28 : i32
      %c5_i32 = arith.constant 5 : i32
      %53 = arith.addi %52, %c5_i32 : i32
      %54 = arith.index_cast %53 : i32 to index
      %55 = memref.load %arg2[%54] : memref<8xi32, #tpu.memory_space<smem>>
      %56 = arith.index_cast %55 : i32 to index
      %c0_29 = arith.constant 0 : index
      %57 = vector.load %arg3[%56, %c0_29] : memref<64x16xf32, #tpu.memory_space<vmem>>, vector<1x16xf32>
      %c5 = arith.constant 5 : index
      %c0_30 = arith.constant 0 : index
      %58 = vector.load %arg17[%c5, %c0_30] : memref<8x16xf32, #tpu.memory_space<vmem>>, vector<1x16xf32>
      tpu.vector_store %arg17[%c5, %c0_30], %57 {strides = array<i32>} : memref<8x16xf32, #tpu.memory_space<vmem>>, vector<1x16xf32>,
      %c8_i32_31 = arith.constant 8 : i32
      %59 = arith.muli %arg0, %c8_i32_31 : i32
      %c6_i32 = arith.constant 6 : i32
      %60 = arith.addi %59, %c6_i32 : i32
      %61 = arith.index_cast %60 : i32 to index
      %62 = memref.load %arg2[%61] : memref<8xi32, #tpu.memory_space<smem>>
      %63 = arith.index_cast %62 : i32 to index
      %c0_32 = arith.constant 0 : index
      %64 = vector.load %arg3[%63, %c0_32] : memref<64x16xf32, #tpu.memory_space<vmem>>, vector<1x16xf32>
      %c6 = arith.constant 6 : index
      %c0_33 = arith.constant 0 : index
      %65 = vector.load %arg17[%c6, %c0_33] : memref<8x16xf32, #tpu.memory_space<vmem>>, vector<1x16xf32>
      tpu.vector_store %arg17[%c6, %c0_33], %64 {strides = array<i32>} : memref<8x16xf32, #tpu.memory_space<vmem>>, vector<1x16xf32>,
      %c8_i32_34 = arith.constant 8 : i32
      %66 = arith.muli %arg0, %c8_i32_34 : i32
      %c7_i32 = arith.constant 7 : i32
      %67 = arith.addi %66, %c7_i32 : i32
      %68 = arith.index_cast %67 : i32 to index
      %69 = memref.load %arg2[%68] : memref<8xi32, #tpu.memory_space<smem>>
      %70 = arith.index_cast %69 : i32 to index
      %c0_35 = arith.constant 0 : index
      %71 = vector.load %arg3[%70, %c0_35] : memref<64x16xf32, #tpu.memory_space<vmem>>, vector<1x16xf32>
      %c7 = arith.constant 7 : index
      %c0_36 = arith.constant 0 : index
      %72 = vector.load %arg17[%c7, %c0_36] : memref<8x16xf32, #tpu.memory_space<vmem>>, vector<1x16xf32>
      tpu.vector_store %arg17[%c7, %c0_36], %71 {strides = array<i32>} : memref<8x16xf32, #tpu.memory_space<vmem>>, vector<1x16xf32>,
      %c0_37 = arith.constant 0 : index
      %c0_38 = arith.constant 0 : index
      %73 = vector.load %arg17[%c0_37, %c0_38] : memref<8x16xf32, #tpu.memory_space<vmem>>, vector<8x16xf32>
      %c0_39 = arith.constant 0 : index
      %c0_40 = arith.constant 0 : index
      %c0_41 = arith.constant 0 : index
      %74 = vector.load %arg15[%c0_39, %c0_40, %c0_41] : memref<3x8x32xf32, #tpu.memory_space<vmem>>, vector<1x8x32xf32>
      %75 = vector.shape_cast %74 : vector<1x8x32xf32> to vector<8x32xf32>
      %c0_42 = arith.constant 0 : index
      %c0_43 = arith.constant 0 : index
      %c0_44 = arith.constant 0 : index
      %76 = vector.load %arg16[%c0_42, %c0_43, %c0_44] : memref<3x8x32xf32, #tpu.memory_space<vmem>>, vector<1x8x32xf32>
      %77 = vector.shape_cast %76 : vector<1x8x32xf32> to vector<8x32xf32>
      %78 = tpu.concatenate %73, %75 in 1 : vector<8x16xf32>, vector<8x32xf32> -> vector<8x48xf32>
      %79 = arith.truncf %78 : vector<8x48xf32> to vector<8x48xbf16>
      %c0_45 = arith.constant 0 : index
      %c0_46 = arith.constant 0 : index
      %80 = vector.load %arg6[%c0_45, %c0_46] : memref<48x128xbf16, #tpu.memory_space<vmem>>, vector<48x128xbf16>
      %cst_47 = arith.constant dense<0.000000e+00> : vector<8x128xf32>
      %81 = tpu.matmul %79, %80, %cst_47 {dimension_numbers = #tpu.dot_dimension_numbers<[1], [0], [0], [1], [0, 0, 1, 1], [], []>} : vector<8x48xbf16>, vector<48x128xbf16>, vector<8x128xf32> -> vector<8x128xf32>
      %c0_48 = arith.constant 0 : index
      %c0_49 = arith.constant 0 : index
      %82 = vector.load %arg7[%c0_48, %c0_49] : memref<1x128xf32, #tpu.memory_space<vmem>>, vector<1x128xf32>
      %83 = vector.broadcast %82 : vector<1x128xf32> to vector<8x128xf32>
      %84 = arith.addf %81, %83 : vector<8x128xf32>
      %85 = arith.negf %84 : vector<8x128xf32>
      %86 = math.exp %85 : vector<8x128xf32>
      %cst_50 = arith.constant 1.000000e+00 : f32
      %87 = vector.broadcast %cst_50 : f32 to vector<8x128xf32>
      %88 = arith.addf %87, %86 : vector<8x128xf32>
      %89 = arith.divf %87, %88 : vector<8x128xf32>
      %90 = math.tanh %84 : vector<8x128xf32>
      %91 = vector.extract_strided_slice %89 {offsets = [0, 0], sizes = [8, 32], strides = [1, 1]} : vector<8x128xf32> to vector<8x32xf32>
      %92 = vector.extract_strided_slice %89 {offsets = [0, 32], sizes = [8, 32], strides = [1, 1]} : vector<8x128xf32> to vector<8x32xf32>
      %93 = vector.extract_strided_slice %90 {offsets = [0, 64], sizes = [8, 32], strides = [1, 1]} : vector<8x128xf32> to vector<8x32xf32>
      %94 = vector.extract_strided_slice %89 {offsets = [0, 96], sizes = [8, 32], strides = [1, 1]} : vector<8x128xf32> to vector<8x32xf32>
      %95 = arith.mulf %92, %77 : vector<8x32xf32>
      %96 = arith.mulf %91, %93 : vector<8x32xf32>
      %97 = arith.addf %95, %96 : vector<8x32xf32>
      %98 = math.tanh %97 : vector<8x32xf32>
      %99 = arith.mulf %94, %98 : vector<8x32xf32>
      %c0_51 = arith.constant 0 : index
      %c0_52 = arith.constant 0 : index
      %c0_53 = arith.constant 0 : index
      %100 = vector.load %arg15[%c0_51, %c0_52, %c0_53] : memref<3x8x32xf32, #tpu.memory_space<vmem>>, vector<1x8x32xf32>
      %101 = vector.shape_cast %100 : vector<1x8x32xf32> to vector<8x32xf32>
      %102 = vector.shape_cast %99 : vector<8x32xf32> to vector<1x8x32xf32>
      tpu.vector_store %arg15[%c0_51, %c0_52, %c0_53], %102 {strides = array<i32>} : memref<3x8x32xf32, #tpu.memory_space<vmem>>, vector<1x8x32xf32>,
      %c0_54 = arith.constant 0 : index
      %c0_55 = arith.constant 0 : index
      %c0_56 = arith.constant 0 : index
      %103 = vector.load %arg16[%c0_54, %c0_55, %c0_56] : memref<3x8x32xf32, #tpu.memory_space<vmem>>, vector<1x8x32xf32>
      %104 = vector.shape_cast %103 : vector<1x8x32xf32> to vector<8x32xf32>
      %105 = vector.shape_cast %97 : vector<8x32xf32> to vector<1x8x32xf32>
      tpu.vector_store %arg16[%c0_54, %c0_55, %c0_56], %105 {strides = array<i32>} : memref<3x8x32xf32, #tpu.memory_space<vmem>>, vector<1x8x32xf32>,
      %c1_57 = arith.constant 1 : index
      %c0_58 = arith.constant 0 : index
      %c0_59 = arith.constant 0 : index
      %106 = vector.load %arg15[%c1_57, %c0_58, %c0_59] : memref<3x8x32xf32, #tpu.memory_space<vmem>>, vector<1x8x32xf32>
      %107 = vector.shape_cast %106 : vector<1x8x32xf32> to vector<8x32xf32>
      %c1_60 = arith.constant 1 : index
      %c0_61 = arith.constant 0 : index
      %c0_62 = arith.constant 0 : index
      %108 = vector.load %arg16[%c1_60, %c0_61, %c0_62] : memref<3x8x32xf32, #tpu.memory_space<vmem>>, vector<1x8x32xf32>
      %109 = vector.shape_cast %108 : vector<1x8x32xf32> to vector<8x32xf32>
      %110 = tpu.concatenate %99, %107 in 1 : vector<8x32xf32>, vector<8x32xf32> -> vector<8x64xf32>
      %111 = arith.truncf %110 : vector<8x64xf32> to vector<8x64xbf16>
      %c0_63 = arith.constant 0 : index
      %c0_64 = arith.constant 0 : index
      %112 = vector.load %arg8[%c0_63, %c0_64] : memref<64x128xbf16, #tpu.memory_space<vmem>>, vector<64x128xbf16>
      %cst_65 = arith.constant dense<0.000000e+00> : vector<8x128xf32>
      %113 = tpu.matmul %111, %112, %cst_65 {dimension_numbers = #tpu.dot_dimension_numbers<[1], [0], [0], [1], [0, 0, 1, 1], [], []>} : vector<8x64xbf16>, vector<64x128xbf16>, vector<8x128xf32> -> vector<8x128xf32>
      %c0_66 = arith.constant 0 : index
      %c0_67 = arith.constant 0 : index
      %114 = vector.load %arg9[%c0_66, %c0_67] : memref<1x128xf32, #tpu.memory_space<vmem>>, vector<1x128xf32>
      %115 = vector.broadcast %114 : vector<1x128xf32> to vector<8x128xf32>
      %116 = arith.addf %113, %115 : vector<8x128xf32>
      %117 = arith.negf %116 : vector<8x128xf32>
      %118 = math.exp %117 : vector<8x128xf32>
      %cst_68 = arith.constant 1.000000e+00 : f32
      %119 = vector.broadcast %cst_68 : f32 to vector<8x128xf32>
      %120 = arith.addf %119, %118 : vector<8x128xf32>
      %121 = arith.divf %119, %120 : vector<8x128xf32>
      %122 = math.tanh %116 : vector<8x128xf32>
      %123 = vector.extract_strided_slice %121 {offsets = [0, 0], sizes = [8, 32], strides = [1, 1]} : vector<8x128xf32> to vector<8x32xf32>
      %124 = vector.extract_strided_slice %121 {offsets = [0, 32], sizes = [8, 32], strides = [1, 1]} : vector<8x128xf32> to vector<8x32xf32>
      %125 = vector.extract_strided_slice %122 {offsets = [0, 64], sizes = [8, 32], strides = [1, 1]} : vector<8x128xf32> to vector<8x32xf32>
      %126 = vector.extract_strided_slice %121 {offsets = [0, 96], sizes = [8, 32], strides = [1, 1]} : vector<8x128xf32> to vector<8x32xf32>
      %127 = arith.mulf %124, %109 : vector<8x32xf32>
      %128 = arith.mulf %123, %125 : vector<8x32xf32>
      %129 = arith.addf %127, %128 : vector<8x32xf32>
      %130 = math.tanh %129 : vector<8x32xf32>
      %131 = arith.mulf %126, %130 : vector<8x32xf32>
      %c1_69 = arith.constant 1 : index
      %c0_70 = arith.constant 0 : index
      %c0_71 = arith.constant 0 : index
      %132 = vector.load %arg15[%c1_69, %c0_70, %c0_71] : memref<3x8x32xf32, #tpu.memory_space<vmem>>, vector<1x8x32xf32>
      %133 = vector.shape_cast %132 : vector<1x8x32xf32> to vector<8x32xf32>
      %134 = vector.shape_cast %131 : vector<8x32xf32> to vector<1x8x32xf32>
      tpu.vector_store %arg15[%c1_69, %c0_70, %c0_71], %134 {strides = array<i32>} : memref<3x8x32xf32, #tpu.memory_space<vmem>>, vector<1x8x32xf32>,
      %c1_72 = arith.constant 1 : index
      %c0_73 = arith.constant 0 : index
      %c0_74 = arith.constant 0 : index
      %135 = vector.load %arg16[%c1_72, %c0_73, %c0_74] : memref<3x8x32xf32, #tpu.memory_space<vmem>>, vector<1x8x32xf32>
      %136 = vector.shape_cast %135 : vector<1x8x32xf32> to vector<8x32xf32>
      %137 = vector.shape_cast %129 : vector<8x32xf32> to vector<1x8x32xf32>
      tpu.vector_store %arg16[%c1_72, %c0_73, %c0_74], %137 {strides = array<i32>} : memref<3x8x32xf32, #tpu.memory_space<vmem>>, vector<1x8x32xf32>,
      %c2_75 = arith.constant 2 : index
      %c0_76 = arith.constant 0 : index
      %c0_77 = arith.constant 0 : index
      %138 = vector.load %arg15[%c2_75, %c0_76, %c0_77] : memref<3x8x32xf32, #tpu.memory_space<vmem>>, vector<1x8x32xf32>
      %139 = vector.shape_cast %138 : vector<1x8x32xf32> to vector<8x32xf32>
      %c2_78 = arith.constant 2 : index
      %c0_79 = arith.constant 0 : index
      %c0_80 = arith.constant 0 : index
      %140 = vector.load %arg16[%c2_78, %c0_79, %c0_80] : memref<3x8x32xf32, #tpu.memory_space<vmem>>, vector<1x8x32xf32>
      %141 = vector.shape_cast %140 : vector<1x8x32xf32> to vector<8x32xf32>
      %142 = tpu.concatenate %131, %139 in 1 : vector<8x32xf32>, vector<8x32xf32> -> vector<8x64xf32>
      %143 = arith.truncf %142 : vector<8x64xf32> to vector<8x64xbf16>
      %c0_81 = arith.constant 0 : index
      %c0_82 = arith.constant 0 : index
      %144 = vector.load %arg10[%c0_81, %c0_82] : memref<64x128xbf16, #tpu.memory_space<vmem>>, vector<64x128xbf16>
      %cst_83 = arith.constant dense<0.000000e+00> : vector<8x128xf32>
      %145 = tpu.matmul %143, %144, %cst_83 {dimension_numbers = #tpu.dot_dimension_numbers<[1], [0], [0], [1], [0, 0, 1, 1], [], []>} : vector<8x64xbf16>, vector<64x128xbf16>, vector<8x128xf32> -> vector<8x128xf32>
      %c0_84 = arith.constant 0 : index
      %c0_85 = arith.constant 0 : index
      %146 = vector.load %arg11[%c0_84, %c0_85] : memref<1x128xf32, #tpu.memory_space<vmem>>, vector<1x128xf32>
      %147 = vector.broadcast %146 : vector<1x128xf32> to vector<8x128xf32>
      %148 = arith.addf %145, %147 : vector<8x128xf32>
      %149 = arith.negf %148 : vector<8x128xf32>
      %150 = math.exp %149 : vector<8x128xf32>
      %cst_86 = arith.constant 1.000000e+00 : f32
      %151 = vector.broadcast %cst_86 : f32 to vector<8x128xf32>
      %152 = arith.addf %151, %150 : vector<8x128xf32>
      %153 = arith.divf %151, %152 : vector<8x128xf32>
      %154 = math.tanh %148 : vector<8x128xf32>
      %155 = vector.extract_strided_slice %153 {offsets = [0, 0], sizes = [8, 32], strides = [1, 1]} : vector<8x128xf32> to vector<8x32xf32>
      %156 = vector.extract_strided_slice %153 {offsets = [0, 32], sizes = [8, 32], strides = [1, 1]} : vector<8x128xf32> to vector<8x32xf32>
      %157 = vector.extract_strided_slice %154 {offsets = [0, 64], sizes = [8, 32], strides = [1, 1]} : vector<8x128xf32> to vector<8x32xf32>
      %158 = vector.extract_strided_slice %153 {offsets = [0, 96], sizes = [8, 32], strides = [1, 1]} : vector<8x128xf32> to vector<8x32xf32>
      %159 = arith.mulf %156, %141 : vector<8x32xf32>
      %160 = arith.mulf %155, %157 : vector<8x32xf32>
      %161 = arith.addf %159, %160 : vector<8x32xf32>
      %162 = math.tanh %161 : vector<8x32xf32>
      %163 = arith.mulf %158, %162 : vector<8x32xf32>
      %c2_87 = arith.constant 2 : index
      %c0_88 = arith.constant 0 : index
      %c0_89 = arith.constant 0 : index
      %164 = vector.load %arg15[%c2_87, %c0_88, %c0_89] : memref<3x8x32xf32, #tpu.memory_space<vmem>>, vector<1x8x32xf32>
      %165 = vector.shape_cast %164 : vector<1x8x32xf32> to vector<8x32xf32>
      %166 = vector.shape_cast %163 : vector<8x32xf32> to vector<1x8x32xf32>
      tpu.vector_store %arg15[%c2_87, %c0_88, %c0_89], %166 {strides = array<i32>} : memref<3x8x32xf32, #tpu.memory_space<vmem>>, vector<1x8x32xf32>,
      %c2_90 = arith.constant 2 : index
      %c0_91 = arith.constant 0 : index
      %c0_92 = arith.constant 0 : index
      %167 = vector.load %arg16[%c2_90, %c0_91, %c0_92] : memref<3x8x32xf32, #tpu.memory_space<vmem>>, vector<1x8x32xf32>
      %168 = vector.shape_cast %167 : vector<1x8x32xf32> to vector<8x32xf32>
      %169 = vector.shape_cast %161 : vector<8x32xf32> to vector<1x8x32xf32>
      tpu.vector_store %arg16[%c2_90, %c0_91, %c0_92], %169 {strides = array<i32>} : memref<3x8x32xf32, #tpu.memory_space<vmem>>, vector<1x8x32xf32>,
      %170 = arith.truncf %163 : vector<8x32xf32> to vector<8x32xbf16>
      %c0_93 = arith.constant 0 : index
      %c0_94 = arith.constant 0 : index
      %171 = vector.load %arg18[%c0_93, %c0_94] : memref<8x32xbf16, #tpu.memory_space<vmem>>, vector<8x32xbf16>
      tpu.vector_store %arg18[%c0_93, %c0_94], %170 {strides = array<i32>} : memref<8x32xbf16, #tpu.memory_space<vmem>>, vector<8x32xbf16>,
    } else {
    }
    %c0 = arith.constant 0 : index
    %c0_4 = arith.constant 0 : index
    %8 = vector.load %arg18[%c0, %c0_4] : memref<8x32xbf16, #tpu.memory_space<vmem>>, vector<8x32xbf16>
    %c0_5 = arith.constant 0 : index
    %c0_6 = arith.constant 0 : index
    %9 = vector.load %arg12[%c0_5, %c0_6] : memref<32x128xbf16, #tpu.memory_space<vmem>>, vector<32x128xbf16>
    %cst = arith.constant dense<0.000000e+00> : vector<8x128xf32>
    %10 = tpu.matmul %8, %9, %cst {dimension_numbers = #tpu.dot_dimension_numbers<[1], [0], [0], [1], [0, 0, 1, 1], [], []>} : vector<8x32xbf16>, vector<32x128xbf16>, vector<8x128xf32> -> vector<8x128xf32>
    %c0_7 = arith.constant 0 : index
    %c0_8 = arith.constant 0 : index
    %11 = vector.load %arg13[%c0_7, %c0_8] : memref<1x128xf32, #tpu.memory_space<vmem>>, vector<1x128xf32>
    %12 = vector.broadcast %11 : vector<1x128xf32> to vector<8x128xf32>
    %13 = arith.addf %10, %12 : vector<8x128xf32>
    %c0_9 = arith.constant 0 : index
    %c0_10 = arith.constant 0 : index
    %c0_11 = arith.constant 0 : index
    %14 = vector.load %arg14[%c0_9, %c0_10, %c0_11] : memref<1x8x128xf32, #tpu.memory_space<vmem>>, vector<1x8x128xf32>
    %15 = vector.shape_cast %14 : vector<1x8x128xf32> to vector<8x128xf32>
    %16 = vector.shape_cast %13 : vector<8x128xf32> to vector<1x8x128xf32>
    tpu.vector_store %arg14[%c0_9, %c0_10, %c0_11], %16 {strides = array<i32>} : memref<1x8x128xf32, #tpu.memory_space<vmem>>, vector<1x8x128xf32>,
    return
  }
  func.func @transform_0(%arg0: i32, %arg1: i32, %arg2: memref<8xi32, #tpu.memory_space<smem>>) -> (i32, i32) {
    %c0_i32 = arith.constant 0 : i32
    %c0_i32_0 = arith.constant 0 : i32
    %c0_i32_1 = arith.constant 0 : i32
    return %c0_i32, %c0_i32_0 : i32, i32
  }
  func.func @transform_1(%arg0: i32, %arg1: i32, %arg2: memref<8xi32, #tpu.memory_space<smem>>) -> (i32, i32, i32) {
    %c0_i32 = arith.constant 0 : i32
    %c0_i32_0 = arith.constant 0 : i32
    %c0_i32_1 = arith.constant 0 : i32
    %c0_i32_2 = arith.constant 0 : i32
    return %c0_i32, %c0_i32_0, %c0_i32_1 : i32, i32, i32
  }
  func.func @transform_2(%arg0: i32, %arg1: i32, %arg2: memref<8xi32, #tpu.memory_space<smem>>) -> (i32, i32, i32) {
    %c0_i32 = arith.constant 0 : i32
    %c0_i32_0 = arith.constant 0 : i32
    %c0_i32_1 = arith.constant 0 : i32
    %c0_i32_2 = arith.constant 0 : i32
    return %c0_i32, %c0_i32_0, %c0_i32_1 : i32, i32, i32
  }
  func.func @transform_3(%arg0: i32, %arg1: i32, %arg2: memref<8xi32, #tpu.memory_space<smem>>) -> (i32, i32) {
    %c0_i32 = arith.constant 0 : i32
    %c0_i32_0 = arith.constant 0 : i32
    %c0_i32_1 = arith.constant 0 : i32
    return %c0_i32, %c0_i32_0 : i32, i32
  }
  func.func @transform_4(%arg0: i32, %arg1: i32, %arg2: memref<8xi32, #tpu.memory_space<smem>>) -> (i32, i32) {
    %c0_i32 = arith.constant 0 : i32
    %c0_i32_0 = arith.constant 0 : i32
    %c0_i32_1 = arith.constant 0 : i32
    return %c0_i32, %c0_i32_0 : i32, i32
  }
  func.func @transform_5(%arg0: i32, %arg1: i32, %arg2: memref<8xi32, #tpu.memory_space<smem>>) -> (i32, i32) {
    %c0_i32 = arith.constant 0 : i32
    %c0_i32_0 = arith.constant 0 : i32
    %c0_i32_1 = arith.constant 0 : i32
    return %c0_i32, %c0_i32_0 : i32, i32
  }
  func.func @transform_6(%arg0: i32, %arg1: i32, %arg2: memref<8xi32, #tpu.memory_space<smem>>) -> (i32, i32) {
    %c0_i32 = arith.constant 0 : i32
    %c0_i32_0 = arith.constant 0 : i32
    %c0_i32_1 = arith.constant 0 : i32
    return %c0_i32, %c0_i32_0 : i32, i32
  }
  func.func @transform_7(%arg0: i32, %arg1: i32, %arg2: memref<8xi32, #tpu.memory_space<smem>>) -> (i32, i32) {
    %c0_i32 = arith.constant 0 : i32
    %c0_i32_0 = arith.constant 0 : i32
    %c0_i32_1 = arith.constant 0 : i32
    return %c0_i32, %c0_i32_0 : i32, i32
  }
  func.func @transform_8(%arg0: i32, %arg1: i32, %arg2: memref<8xi32, #tpu.memory_space<smem>>) -> (i32, i32) {
    %c0_i32 = arith.constant 0 : i32
    %c0_i32_0 = arith.constant 0 : i32
    %c0_i32_1 = arith.constant 0 : i32
    return %c0_i32, %c0_i32_0 : i32, i32
  }
  func.func @transform_9(%arg0: i32, %arg1: i32, %arg2: memref<8xi32, #tpu.memory_space<smem>>) -> (i32, i32) {
    %c0_i32 = arith.constant 0 : i32
    %c0_i32_0 = arith.constant 0 : i32
    return %c0_i32, %arg1 : i32, i32
  }
  func.func @transform_10(%arg0: i32, %arg1: i32, %arg2: memref<8xi32, #tpu.memory_space<smem>>) -> (i32, i32) {
    %c0_i32 = arith.constant 0 : i32
    %c0_i32_0 = arith.constant 0 : i32
    return %c0_i32, %arg1 : i32, i32
  }
  func.func @transform_11(%arg0: i32, %arg1: i32, %arg2: memref<8xi32, #tpu.memory_space<smem>>) -> (i32, i32, i32) {
    %c0_i32 = arith.constant 0 : i32
    %c0_i32_0 = arith.constant 0 : i32
    return %arg0, %c0_i32, %arg1 : i32, i32, i32
  }
  func.func @transform_12(%arg0: i32, %arg1: i32, %arg2: memref<8xi32, #tpu.memory_space<smem>>) -> (i32, i32, i32) {
    %c0_i32 = arith.constant 0 : i32
    %c0_i32_0 = arith.constant 0 : i32
    %c0_i32_1 = arith.constant 0 : i32
    %c0_i32_2 = arith.constant 0 : i32
    return %c0_i32, %c0_i32_0, %c0_i32_1 : i32, i32, i32
  }
  func.func @transform_13(%arg0: i32, %arg1: i32, %arg2: memref<8xi32, #tpu.memory_space<smem>>) -> (i32, i32, i32) {
    %c0_i32 = arith.constant 0 : i32
    %c0_i32_0 = arith.constant 0 : i32
    %c0_i32_1 = arith.constant 0 : i32
    %c0_i32_2 = arith.constant 0 : i32
    return %c0_i32, %c0_i32_0, %c0_i32_1 : i32, i32, i32
  }
}

module attributes {stable_mosaic.version = 11 : i64} {
  func.func @kernel(%arg0: i32, %arg1: i32, %arg2: memref<8xi32, #tpu.memory_space<smem>>, %arg3: memref<64x16xf32, #tpu.memory_space<vmem>>, %arg4: memref<3x8x32xf32, #tpu.memory_space<vmem>>, %arg5: memref<3x8x32xf32, #tpu.memory_space<vmem>>, %arg6: memref<48x128xbf16, #tpu.memory_space<vmem>>, %arg7: memref<1x128xf32, #tpu.memory_space<vmem>>, %arg8: memref<64x128xbf16, #tpu.memory_space<vmem>>, %arg9: memref<1x128xf32, #tpu.memory_space<vmem>>, %arg10: memref<64x128xbf16, #tpu.memory_space<vmem>>, %arg11: memref<1x128xf32, #tpu.memory_space<vmem>>, %arg12: memref<32x128xbf16, #tpu.memory_space<vmem>>, %arg13: memref<1x128xf32, #tpu.memory_space<vmem>>, %arg14: memref<1x8x128xf32, #tpu.memory_space<vmem>>, %arg15: memref<3x8x32xf32, #tpu.memory_space<vmem>>, %arg16: memref<3x8x32xf32, #tpu.memory_space<vmem>>, %arg17: memref<8x16xf32, #tpu.memory_space<vmem>>, %arg18: memref<8x32xbf16, #tpu.memory_space<vmem>>) attributes {dimension_semantics = [#tpu.dimension_semantics<arbitrary>, #tpu.dimension_semantics<arbitrary>], iteration_bounds = array<i64: 1, 1>, scalar_prefetch = 1 : i64, scratch_operands = 2 : i64, tpu.core_type = #tpu.core_type<tc>, window_params = [{pipeline_mode = #tpu.pipeline_mode<synchronous>, transform_indices = @transform_0, window_bounds = array<i64: 64, 16>}, {pipeline_mode = #tpu.pipeline_mode<synchronous>, transform_indices = @transform_1, window_bounds = array<i64: 3, 8, 32>}, {pipeline_mode = #tpu.pipeline_mode<synchronous>, transform_indices = @transform_2, window_bounds = array<i64: 3, 8, 32>}, {pipeline_mode = #tpu.pipeline_mode<synchronous>, transform_indices = @transform_3, window_bounds = array<i64: 48, 128>}, {pipeline_mode = #tpu.pipeline_mode<synchronous>, transform_indices = @transform_4, window_bounds = array<i64: 1, 128>}, {pipeline_mode = #tpu.pipeline_mode<synchronous>, transform_indices = @transform_5, window_bounds = array<i64: 64, 128>}, {pipeline_mode = #tpu.pipeline_mode<synchronous>, transform_indices = @transform_6, window_bounds = array<i64: 1, 128>}, {pipeline_mode = #tpu.pipeline_mode<synchronous>, transform_indices = @transform_7, window_bounds = array<i64: 64, 128>}, {pipeline_mode = #tpu.pipeline_mode<synchronous>, transform_indices = @transform_8, window_bounds = array<i64: 1, 128>}, {transform_indices = @transform_9, window_bounds = array<i64: 32, 128>}, {transform_indices = @transform_10, window_bounds = array<i64: 1, 128>}, {transform_indices = @transform_11, window_bounds = array<i64: 1, 8, 128>}, {pipeline_mode = #tpu.pipeline_mode<synchronous>, transform_indices = @transform_12, window_bounds = array<i64: 3, 8, 32>}, {pipeline_mode = #tpu.pipeline_mode<synchronous>, transform_indices = @transform_13, window_bounds = array<i64: 3, 8, 32>}]} {
    %c0_i32 = arith.constant 0 : i32
    %0 = arith.cmpi eq, %arg0, %c0_i32 : i32
    %c0_i32_0 = arith.constant 0 : i32
    %1 = arith.cmpi eq, %arg1, %c0_i32_0 : i32
    %2 = arith.andi %0, %1 : i1
    %3 = arith.extui %2 : i1 to i32
    %c0_i32_1 = arith.constant 0 : i32
    %4 = arith.cmpi ne, %3, %c0_i32_1 : i32
    scf.if %4 {
      %c0_12 = arith.constant 0 : index
      %c0_13 = arith.constant 0 : index
      %c0_14 = arith.constant 0 : index
      %17 = vector.load %arg4[%c0_12, %c0_13, %c0_14] : memref<3x8x32xf32, #tpu.memory_space<vmem>>, vector<3x8x32xf32>
      %c0_15 = arith.constant 0 : index
      %c0_16 = arith.constant 0 : index
      %c0_17 = arith.constant 0 : index
      %18 = vector.load %arg15[%c0_15, %c0_16, %c0_17] : memref<3x8x32xf32, #tpu.memory_space<vmem>>, vector<3x8x32xf32>
      tpu.vector_store %arg15[%c0_15, %c0_16, %c0_17], %17 {strides = array<i32>} : memref<3x8x32xf32, #tpu.memory_space<vmem>>, vector<3x8x32xf32>,
      %c0_18 = arith.constant 0 : index
      %c0_19 = arith.constant 0 : index
      %c0_20 = arith.constant 0 : index
      %19 = vector.load %arg5[%c0_18, %c0_19, %c0_20] : memref<3x8x32xf32, #tpu.memory_space<vmem>>, vector<3x8x32xf32>
      %c0_21 = arith.constant 0 : index
      %c0_22 = arith.constant 0 : index
      %c0_23 = arith.constant 0 : index
      %20 = vector.load %arg16[%c0_21, %c0_22, %c0_23] : memref<3x8x32xf32, #tpu.memory_space<vmem>>, vector<3x8x32xf32>
      tpu.vector_store %arg16[%c0_21, %c0_22, %c0_23], %19 {strides = array<i32>} : memref<3x8x32xf32, #tpu.memory_space<vmem>>, vector<3x8x32xf32>,
    } else {
    }
    %c0_i32_2 = arith.constant 0 : i32
    %5 = arith.cmpi eq, %arg1, %c0_i32_2 : i32
    %6 = arith.extui %5 : i1 to i32
    %c0_i32_3 = arith.constant 0 : i32
    %7 = arith.cmpi ne, %6, %c0_i32_3 : i32
    scf.if %7 {
      %c8_i32 = arith.constant 8 : i32
      %17 = arith.muli %arg0, %c8_i32 : i32
      %c0_i32_12 = arith.constant 0 : i32
      %18 = arith.addi %17, %c0_i32_12 : i32
      %19 = arith.index_cast %18 : i32 to index
      %20 = memref.load %arg2[%19] : memref<8xi32, #tpu.memory_space<smem>>
      %21 = arith.index_cast %20 : i32 to index
      %c0_13 = arith.constant 0 : index
      %22 = vector.load %arg3[%21, %c0_13] : memref<64x16xf32, #tpu.memory_space<vmem>>, vector<1x16xf32>
      %c0_14 = arith.constant 0 : index
      %c0_15 = arith.constant 0 : index
      %23 = vector.load %arg17[%c0_14, %c0_15] : memref<8x16xf32, #tpu.memory_space<vmem>>, vector<1x16xf32>
      tpu.vector_store %arg17[%c0_14, %c0_15], %22 {strides = array<i32>} : memref<8x16xf32, #tpu.memory_space<vmem>>, vector<1x16xf32>,
      %c8_i32_16 = arith.constant 8 : i32
      %24 = arith.muli %arg0, %c8_i32_16 : i32
      %c1_i32 = arith.constant 1 : i32
      %25 = arith.addi %24, %c1_i32 : i32
      %26 = arith.index_cast %25 : i32 to index
      %27 = memref.load %arg2[%26] : memref<8xi32, #tpu.memory_space<smem>>
      %28 = arith.index_cast %27 : i32 to index
      %c0_17 = arith.constant 0 : index
      %29 = vector.load %arg3[%28, %c0_17] : memref<64x16xf32, #tpu.memory_space<vmem>>, vector<1x16xf32>
      %c1 = arith.constant 1 : index
      %c0_18 = arith.constant 0 : index
      %30 = vector.load %arg17[%c1, %c0_18] : memref<8x16xf32, #tpu.memory_space<vmem>>, vector<1x16xf32>
      tpu.vector_store %arg17[%c1, %c0_18], %29 {strides = array<i32>} : memref<8x16xf32, #tpu.memory_space<vmem>>, vector<1x16xf32>,
      %c8_i32_19 = arith.constant 8 : i32
      %31 = arith.muli %arg0, %c8_i32_19 : i32
      %c2_i32 = arith.constant 2 : i32
      %32 = arith.addi %31, %c2_i32 : i32
      %33 = arith.index_cast %32 : i32 to index
      %34 = memref.load %arg2[%33] : memref<8xi32, #tpu.memory_space<smem>>
      %35 = arith.index_cast %34 : i32 to index
      %c0_20 = arith.constant 0 : index
      %36 = vector.load %arg3[%35, %c0_20] : memref<64x16xf32, #tpu.memory_space<vmem>>, vector<1x16xf32>
      %c2 = arith.constant 2 : index
      %c0_21 = arith.constant 0 : index
      %37 = vector.load %arg17[%c2, %c0_21] : memref<8x16xf32, #tpu.memory_space<vmem>>, vector<1x16xf32>
      tpu.vector_store %arg17[%c2, %c0_21], %36 {strides = array<i32>} : memref<8x16xf32, #tpu.memory_space<vmem>>, vector<1x16xf32>,
      %c8_i32_22 = arith.constant 8 : i32
      %38 = arith.muli %arg0, %c8_i32_22 : i32
      %c3_i32 = arith.constant 3 : i32
      %39 = arith.addi %38, %c3_i32 : i32
      %40 = arith.index_cast %39 : i32 to index
      %41 = memref.load %arg2[%40] : memref<8xi32, #tpu.memory_space<smem>>
      %42 = arith.index_cast %41 : i32 to index
      %c0_23 = arith.constant 0 : index
      %43 = vector.load %arg3[%42, %c0_23] : memref<64x16xf32, #tpu.memory_space<vmem>>, vector<1x16xf32>
      %c3 = arith.constant 3 : index
      %c0_24 = arith.constant 0 : index
      %44 = vector.load %arg17[%c3, %c0_24] : memref<8x16xf32, #tpu.memory_space<vmem>>, vector<1x16xf32>
      tpu.vector_store %arg17[%c3, %c0_24], %43 {strides = array<i32>} : memref<8x16xf32, #tpu.memory_space<vmem>>, vector<1x16xf32>,
      %c8_i32_25 = arith.constant 8 : i32
      %45 = arith.muli %arg0, %c8_i32_25 : i32
      %c4_i32 = arith.constant 4 : i32
      %46 = arith.addi %45, %c4_i32 : i32
      %47 = arith.index_cast %46 : i32 to index
      %48 = memref.load %arg2[%47] : memref<8xi32, #tpu.memory_space<smem>>
      %49 = arith.index_cast %48 : i32 to index
      %c0_26 = arith.constant 0 : index
      %50 = vector.load %arg3[%49, %c0_26] : memref<64x16xf32, #tpu.memory_space<vmem>>, vector<1x16xf32>
      %c4 = arith.constant 4 : index
      %c0_27 = arith.constant 0 : index
      %51 = vector.load %arg17[%c4, %c0_27] : memref<8x16xf32, #tpu.memory_space<vmem>>, vector<1x16xf32>
      tpu.vector_store %arg17[%c4, %c0_27], %50 {strides = array<i32>} : memref<8x16xf32, #tpu.memory_space<vmem>>, vector<1x16xf32>,
      %c8_i32_28 = arith.constant 8 : i32
      %52 = arith.muli %arg0, %c8_i32_28 : i32
      %c5_i32 = arith.constant 5 : i32
      %53 = arith.addi %52, %c5_i32 : i32
      %54 = arith.index_cast %53 : i32 to index
      %55 = memref.load %arg2[%54] : memref<8xi32, #tpu.memory_space<smem>>
      %56 = arith.index_cast %55 : i32 to index
      %c0_29 = arith.constant 0 : index
      %57 = vector.load %arg3[%56, %c0_29] : memref<64x16xf32, #tpu.memory_space<vmem>>, vector<1x16xf32>
      %c5 = arith.constant 5 : index
      %c0_30 = arith.constant 0 : index
      %58 = vector.load %arg17[%c5, %c0_30] : memref<8x16xf32, #tpu.memory_space<vmem>>, vector<1x16xf32>
      tpu.vector_store %arg17[%c5, %c0_30], %57 {strides = array<i32>} : memref<8x16xf32, #tpu.memory_space<vmem>>, vector<1x16xf32>,
      %c8_i32_31 = arith.constant 8 : i32
      %59 = arith.muli %arg0, %c8_i32_31 : i32
      %c6_i32 = arith.constant 6 : i32
      %60 = arith.addi %59, %c6_i32 : i32
      %61 = arith.index_cast %60 : i32 to index
      %62 = memref.load %arg2[%61] : memref<8xi32, #tpu.memory_space<smem>>
      %63 = arith.index_cast %62 : i32 to index
      %c0_32 = arith.constant 0 : index
      %64 = vector.load %arg3[%63, %c0_32] : memref<64x16xf32, #tpu.memory_space<vmem>>, vector<1x16xf32>
      %c6 = arith.constant 6 : index
      %c0_33 = arith.constant 0 : index
      %65 = vector.load %arg17[%c6, %c0_33] : memref<8x16xf32, #tpu.memory_space<vmem>>, vector<1x16xf32>
      tpu.vector_store %arg17[%c6, %c0_33], %64 {strides = array<i32>} : memref<8x16xf32, #tpu.memory_space<vmem>>, vector<1x16xf32>,
      %c8_i32_34 = arith.constant 8 : i32
      %66 = arith.muli %arg0, %c8_i32_34 : i32
      %c7_i32 = arith.constant 7 : i32
      %67 = arith.addi %66, %c7_i32 : i32
      %68 = arith.index_cast %67 : i32 to index
      %69 = memref.load %arg2[%68] : memref<8xi32, #tpu.memory_space<smem>>
      %70 = arith.index_cast %69 : i32 to index
      %c0_35 = arith.constant 0 : index
      %71 = vector.load %arg3[%70, %c0_35] : memref<64x16xf32, #tpu.memory_space<vmem>>, vector<1x16xf32>
      %c7 = arith.constant 7 : index
      %c0_36 = arith.constant 0 : index
      %72 = vector.load %arg17[%c7, %c0_36] : memref<8x16xf32, #tpu.memory_space<vmem>>, vector<1x16xf32>
      tpu.vector_store %arg17[%c7, %c0_36], %71 {strides = array<i32>} : memref<8x16xf32, #tpu.memory_space<vmem>>, vector<1x16xf32>,
      %c0_37 = arith.constant 0 : index
      %c0_38 = arith.constant 0 : index
      %73 = vector.load %arg17[%c0_37, %c0_38] : memref<8x16xf32, #tpu.memory_space<vmem>>, vector<8x16xf32>
      %c0_39 = arith.constant 0 : index
      %c0_40 = arith.constant 0 : index
      %c0_41 = arith.constant 0 : index
      %74 = vector.load %arg15[%c0_39, %c0_40, %c0_41] : memref<3x8x32xf32, #tpu.memory_space<vmem>>, vector<1x8x32xf32>
      %75 = vector.shape_cast %74 : vector<1x8x32xf32> to vector<8x32xf32>
      %c0_42 = arith.constant 0 : index
      %c0_43 = arith.constant 0 : index
      %c0_44 = arith.constant 0 : index
      %76 = vector.load %arg16[%c0_42, %c0_43, %c0_44] : memref<3x8x32xf32, #tpu.memory_space<vmem>>, vector<1x8x32xf32>
      %77 = vector.shape_cast %76 : vector<1x8x32xf32> to vector<8x32xf32>
      %78 = tpu.concatenate %73, %75 in 1 : vector<8x16xf32>, vector<8x32xf32> -> vector<8x48xf32>
      %79 = arith.truncf %78 : vector<8x48xf32> to vector<8x48xbf16>
      %c0_45 = arith.constant 0 : index
      %c0_46 = arith.constant 0 : index
      %80 = vector.load %arg6[%c0_45, %c0_46] : memref<48x128xbf16, #tpu.memory_space<vmem>>, vector<48x128xbf16>
      %cst_47 = arith.constant dense<0.000000e+00> : vector<8x128xf32>
      %81 = tpu.matmul %79, %80, %cst_47 {dimension_numbers = #tpu.dot_dimension_numbers<[1], [0], [0], [1], [0, 0, 1, 1], [], []>} : vector<8x48xbf16>, vector<48x128xbf16>, vector<8x128xf32> -> vector<8x128xf32>
      %c0_48 = arith.constant 0 : index
      %c0_49 = arith.constant 0 : index
      %82 = vector.load %arg7[%c0_48, %c0_49] : memref<1x128xf32, #tpu.memory_space<vmem>>, vector<1x128xf32>
      %83 = vector.broadcast %82 : vector<1x128xf32> to vector<8x128xf32>
      %84 = arith.addf %81, %83 : vector<8x128xf32>
      %85 = arith.negf %84 : vector<8x128xf32>
      %86 = math.exp %85 : vector<8x128xf32>
      %cst_50 = arith.constant 1.000000e+00 : f32
      %87 = vector.broadcast %cst_50 : f32 to vector<8x128xf32>
      %88 = arith.addf %87, %86 : vector<8x128xf32>
      %89 = arith.divf %87, %88 : vector<8x128xf32>
      %90 = math.tanh %84 : vector<8x128xf32>
      %91 = vector.extract_strided_slice %89 {offsets = [0, 0], sizes = [8, 32], strides = [1, 1]} : vector<8x128xf32> to vector<8x32xf32>
      %92 = vector.extract_strided_slice %89 {offsets = [0, 32], sizes = [8, 32], strides = [1, 1]} : vector<8x128xf32> to vector<8x32xf32>
      %93 = vector.extract_strided_slice %90 {offsets = [0, 64], sizes = [8, 32], strides = [1, 1]} : vector<8x128xf32> to vector<8x32xf32>
      %94 = vector.extract_strided_slice %89 {offsets = [0, 96], sizes = [8, 32], strides = [1, 1]} : vector<8x128xf32> to vector<8x32xf32>
      %95 = arith.mulf %92, %77 : vector<8x32xf32>
      %96 = arith.mulf %91, %93 : vector<8x32xf32>
      %97 = arith.addf %95, %96 : vector<8x32xf32>
      %98 = math.tanh %97 : vector<8x32xf32>
      %99 = arith.mulf %94, %98 : vector<8x32xf32>
      %c0_51 = arith.constant 0 : index
      %c0_52 = arith.constant 0 : index
      %c0_53 = arith.constant 0 : index
      %100 = vector.load %arg15[%c0_51, %c0_52, %c0_53] : memref<3x8x32xf32, #tpu.memory_space<vmem>>, vector<1x8x32xf32>
      %101 = vector.shape_cast %100 : vector<1x8x32xf32> to vector<8x32xf32>
      %102 = vector.shape_cast %99 : vector<8x32xf32> to vector<1x8x32xf32>
      tpu.vector_store %arg15[%c0_51, %c0_52, %c0_53], %102 {strides = array<i32>} : memref<3x8x32xf32, #tpu.memory_space<vmem>>, vector<1x8x32xf32>,
      %c0_54 = arith.constant 0 : index
      %c0_55 = arith.constant 0 : index
      %c0_56 = arith.constant 0 : index
      %103 = vector.load %arg16[%c0_54, %c0_55, %c0_56] : memref<3x8x32xf32, #tpu.memory_space<vmem>>, vector<1x8x32xf32>
      %104 = vector.shape_cast %103 : vector<1x8x32xf32> to vector<8x32xf32>
      %105 = vector.shape_cast %97 : vector<8x32xf32> to vector<1x8x32xf32>
      tpu.vector_store %arg16[%c0_54, %c0_55, %c0_56], %105 {strides = array<i32>} : memref<3x8x32xf32, #tpu.memory_space<vmem>>, vector<1x8x32xf32>,
      %c1_57 = arith.constant 1 : index
      %c0_58 = arith.constant 0 : index
      %c0_59 = arith.constant 0 : index
      %106 = vector.load %arg15[%c1_57, %c0_58, %c0_59] : memref<3x8x32xf32, #tpu.memory_space<vmem>>, vector<1x8x32xf32>
      %107 = vector.shape_cast %106 : vector<1x8x32xf32> to vector<8x32xf32>
      %c1_60 = arith.constant 1 : index
      %c0_61 = arith.constant 0 : index
      %c0_62 = arith.constant 0 : index
      %108 = vector.load %arg16[%c1_60, %c0_61, %c0_62] : memref<3x8x32xf32, #tpu.memory_space<vmem>>, vector<1x8x32xf32>
      %109 = vector.shape_cast %108 : vector<1x8x32xf32> to vector<8x32xf32>
      %110 = tpu.concatenate %99, %107 in 1 : vector<8x32xf32>, vector<8x32xf32> -> vector<8x64xf32>
      %111 = arith.truncf %110 : vector<8x64xf32> to vector<8x64xbf16>
      %c0_63 = arith.constant 0 : index
      %c0_64 = arith.constant 0 : index
      %112 = vector.load %arg8[%c0_63, %c0_64] : memref<64x128xbf16, #tpu.memory_space<vmem>>, vector<64x128xbf16>
      %cst_65 = arith.constant dense<0.000000e+00> : vector<8x128xf32>
      %113 = tpu.matmul %111, %112, %cst_65 {dimension_numbers = #tpu.dot_dimension_numbers<[1], [0], [0], [1], [0, 0, 1, 1], [], []>} : vector<8x64xbf16>, vector<64x128xbf16>, vector<8x128xf32> -> vector<8x128xf32>
      %c0_66 = arith.constant 0 : index
      %c0_67 = arith.constant 0 : index
      %114 = vector.load %arg9[%c0_66, %c0_67] : memref<1x128xf32, #tpu.memory_space<vmem>>, vector<1x128xf32>
      %115 = vector.broadcast %114 : vector<1x128xf32> to vector<8x128xf32>
      %116 = arith.addf %113, %115 : vector<8x128xf32>
      %117 = arith.negf %116 : vector<8x128xf32>
      %118 = math.exp %117 : vector<8x128xf32>
      %cst_68 = arith.constant 1.000000e+00 : f32
      %119 = vector.broadcast %cst_68 : f32 to vector<8x128xf32>
      %120 = arith.addf %119, %118 : vector<8x128xf32>
      %121 = arith.divf %119, %120 : vector<8x128xf32>
      %122 = math.tanh %116 : vector<8x128xf32>
      %123 = vector.extract_strided_slice %121 {offsets = [0, 0], sizes = [8, 32], strides = [1, 1]} : vector<8x128xf32> to vector<8x32xf32>
      %124 = vector.extract_strided_slice %121 {offsets = [0, 32], sizes = [8, 32], strides = [1, 1]} : vector<8x128xf32> to vector<8x32xf32>
      %125 = vector.extract_strided_slice %122 {offsets = [0, 64], sizes = [8, 32], strides = [1, 1]} : vector<8x128xf32> to vector<8x32xf32>
      %126 = vector.extract_strided_slice %121 {offsets = [0, 96], sizes = [8, 32], strides = [1, 1]} : vector<8x128xf32> to vector<8x32xf32>
      %127 = arith.mulf %124, %109 : vector<8x32xf32>
      %128 = arith.mulf %123, %125 : vector<8x32xf32>
      %129 = arith.addf %127, %128 : vector<8x32xf32>
      %130 = math.tanh %129 : vector<8x32xf32>
      %131 = arith.mulf %126, %130 : vector<8x32xf32>
      %c1_69 = arith.constant 1 : index
      %c0_70 = arith.constant 0 : index
      %c0_71 = arith.constant 0 : index
      %132 = vector.load %arg15[%c1_69, %c0_70, %c0_71] : memref<3x8x32xf32, #tpu.memory_space<vmem>>, vector<1x8x32xf32>
      %133 = vector.shape_cast %132 : vector<1x8x32xf32> to vector<8x32xf32>
      %134 = vector.shape_cast %131 : vector<8x32xf32> to vector<1x8x32xf32>
      tpu.vector_store %arg15[%c1_69, %c0_70, %c0_71], %134 {strides = array<i32>} : memref<3x8x32xf32, #tpu.memory_space<vmem>>, vector<1x8x32xf32>,
      %c1_72 = arith.constant 1 : index
      %c0_73 = arith.constant 0 : index
      %c0_74 = arith.constant 0 : index
      %135 = vector.load %arg16[%c1_72, %c0_73, %c0_74] : memref<3x8x32xf32, #tpu.memory_space<vmem>>, vector<1x8x32xf32>
      %136 = vector.shape_cast %135 : vector<1x8x32xf32> to vector<8x32xf32>
      %137 = vector.shape_cast %129 : vector<8x32xf32> to vector<1x8x32xf32>
      tpu.vector_store %arg16[%c1_72, %c0_73, %c0_74], %137 {strides = array<i32>} : memref<3x8x32xf32, #tpu.memory_space<vmem>>, vector<1x8x32xf32>,
      %c2_75 = arith.constant 2 : index
      %c0_76 = arith.constant 0 : index
      %c0_77 = arith.constant 0 : index
      %138 = vector.load %arg15[%c2_75, %c0_76, %c0_77] : memref<3x8x32xf32, #tpu.memory_space<vmem>>, vector<1x8x32xf32>
      %139 = vector.shape_cast %138 : vector<1x8x32xf32> to vector<8x32xf32>
      %c2_78 = arith.constant 2 : index
      %c0_79 = arith.constant 0 : index
      %c0_80 = arith.constant 0 : index
      %140 = vector.load %arg16[%c2_78, %c0_79, %c0_80] : memref<3x8x32xf32, #tpu.memory_space<vmem>>, vector<1x8x32xf32>
      %141 = vector.shape_cast %140 : vector<1x8x32xf32> to vector<8x32xf32>
      %142 = tpu.concatenate %131, %139 in 1 : vector<8x32xf32>, vector<8x32xf32> -> vector<8x64xf32>
      %143 = arith.truncf %142 : vector<8x64xf32> to vector<8x64xbf16>
      %c0_81 = arith.constant 0 : index
      %c0_82 = arith.constant 0 : index
      %144 = vector.load %arg10[%c0_81, %c0_82] : memref<64x128xbf16, #tpu.memory_space<vmem>>, vector<64x128xbf16>
      %cst_83 = arith.constant dense<0.000000e+00> : vector<8x128xf32>
      %145 = tpu.matmul %143, %144, %cst_83 {dimension_numbers = #tpu.dot_dimension_numbers<[1], [0], [0], [1], [0, 0, 1, 1], [], []>} : vector<8x64xbf16>, vector<64x128xbf16>, vector<8x128xf32> -> vector<8x128xf32>
      %c0_84 = arith.constant 0 : index
      %c0_85 = arith.constant 0 : index
      %146 = vector.load %arg11[%c0_84, %c0_85] : memref<1x128xf32, #tpu.memory_space<vmem>>, vector<1x128xf32>
      %147 = vector.broadcast %146 : vector<1x128xf32> to vector<8x128xf32>
      %148 = arith.addf %145, %147 : vector<8x128xf32>
      %149 = arith.negf %148 : vector<8x128xf32>
      %150 = math.exp %149 : vector<8x128xf32>
      %cst_86 = arith.constant 1.000000e+00 : f32
      %151 = vector.broadcast %cst_86 : f32 to vector<8x128xf32>
      %152 = arith.addf %151, %150 : vector<8x128xf32>
      %153 = arith.divf %151, %152 : vector<8x128xf32>
      %154 = math.tanh %148 : vector<8x128xf32>
      %155 = vector.extract_strided_slice %153 {offsets = [0, 0], sizes = [8, 32], strides = [1, 1]} : vector<8x128xf32> to vector<8x32xf32>
      %156 = vector.extract_strided_slice %153 {offsets = [0, 32], sizes = [8, 32], strides = [1, 1]} : vector<8x128xf32> to vector<8x32xf32>
      %157 = vector.extract_strided_slice %154 {offsets = [0, 64], sizes = [8, 32], strides = [1, 1]} : vector<8x128xf32> to vector<8x32xf32>
      %158 = vector.extract_strided_slice %153 {offsets = [0, 96], sizes = [8, 32], strides = [1, 1]} : vector<8x128xf32> to vector<8x32xf32>
      %159 = arith.mulf %156, %141 : vector<8x32xf32>
      %160 = arith.mulf %155, %157 : vector<8x32xf32>
      %161 = arith.addf %159, %160 : vector<8x32xf32>
      %162 = math.tanh %161 : vector<8x32xf32>
      %163 = arith.mulf %158, %162 : vector<8x32xf32>
      %c2_87 = arith.constant 2 : index
      %c0_88 = arith.constant 0 : index
      %c0_89 = arith.constant 0 : index
      %164 = vector.load %arg15[%c2_87, %c0_88, %c0_89] : memref<3x8x32xf32, #tpu.memory_space<vmem>>, vector<1x8x32xf32>
      %165 = vector.shape_cast %164 : vector<1x8x32xf32> to vector<8x32xf32>
      %166 = vector.shape_cast %163 : vector<8x32xf32> to vector<1x8x32xf32>
      tpu.vector_store %arg15[%c2_87, %c0_88, %c0_89], %166 {strides = array<i32>} : memref<3x8x32xf32, #tpu.memory_space<vmem>>, vector<1x8x32xf32>,
      %c2_90 = arith.constant 2 : index
      %c0_91 = arith.constant 0 : index
      %c0_92 = arith.constant 0 : index
      %167 = vector.load %arg16[%c2_90, %c0_91, %c0_92] : memref<3x8x32xf32, #tpu.memory_space<vmem>>, vector<1x8x32xf32>
      %168 = vector.shape_cast %167 : vector<1x8x32xf32> to vector<8x32xf32>
      %169 = vector.shape_cast %161 : vector<8x32xf32> to vector<1x8x32xf32>
      tpu.vector_store %arg16[%c2_90, %c0_91, %c0_92], %169 {strides = array<i32>} : memref<3x8x32xf32, #tpu.memory_space<vmem>>, vector<1x8x32xf32>,
      %170 = arith.truncf %163 : vector<8x32xf32> to vector<8x32xbf16>
      %c0_93 = arith.constant 0 : index
      %c0_94 = arith.constant 0 : index
      %171 = vector.load %arg18[%c0_93, %c0_94] : memref<8x32xbf16, #tpu.memory_space<vmem>>, vector<8x32xbf16>
      tpu.vector_store %arg18[%c0_93, %c0_94], %170 {strides = array<i32>} : memref<8x32xbf16, #tpu.memory_space<vmem>>, vector<8x32xbf16>,
    } else {
    }
    %c0 = arith.constant 0 : index
    %c0_4 = arith.constant 0 : index
    %8 = vector.load %arg18[%c0, %c0_4] : memref<8x32xbf16, #tpu.memory_space<vmem>>, vector<8x32xbf16>
    %c0_5 = arith.constant 0 : index
    %c0_6 = arith.constant 0 : index
    %9 = vector.load %arg12[%c0_5, %c0_6] : memref<32x128xbf16, #tpu.memory_space<vmem>>, vector<32x128xbf16>
    %cst = arith.constant dense<0.000000e+00> : vector<8x128xf32>
    %10 = tpu.matmul %8, %9, %cst {dimension_numbers = #tpu.dot_dimension_numbers<[1], [0], [0], [1], [0, 0, 1, 1], [], []>} : vector<8x32xbf16>, vector<32x128xbf16>, vector<8x128xf32> -> vector<8x128xf32>
    %c0_7 = arith.constant 0 : index
    %c0_8 = arith.constant 0 : index
    %11 = vector.load %arg13[%c0_7, %c0_8] : memref<1x128xf32, #tpu.memory_space<vmem>>, vector<1x128xf32>
    %12 = vector.broadcast %11 : vector<1x128xf32> to vector<8x128xf32>
    %13 = arith.addf %10, %12 : vector<8x128xf32>
    %c0_9 = arith.constant 0 : index
    %c0_10 = arith.constant 0 : index
    %c0_11 = arith.constant 0 : index
    %14 = vector.load %arg14[%c0_9, %c0_10, %c0_11] : memref<1x8x128xf32, #tpu.memory_space<vmem>>, vector<1x8x128xf32>
    %15 = vector.shape_cast %14 : vector<1x8x128xf32> to vector<8x128xf32>
    %16 = vector.shape_cast %13 : vector<8x128xf32> to vector<1x8x128xf32>
    tpu.vector_store %arg14[%c0_9, %c0_10, %c0_11], %16 {strides = array<i32>} : memref<1x8x128xf32, #tpu.memory_space<vmem>>, vector<1x8x128xf32>,
    return
  }
  func.func @transform_0(%arg0: i32, %arg1: i32, %arg2: memref<8xi32, #tpu.memory_space<smem>>) -> (i32, i32) {
    %c0_i32 = arith.constant 0 : i32
    %c0_i32_0 = arith.constant 0 : i32
    %c0_i32_1 = arith.constant 0 : i32
    return %c0_i32, %c0_i32_0 : i32, i32
  }
  func.func @transform_1(%arg0: i32, %arg1: i32, %arg2: memref<8xi32, #tpu.memory_space<smem>>) -> (i32, i32, i32) {
    %c0_i32 = arith.constant 0 : i32
    %c0_i32_0 = arith.constant 0 : i32
    %c0_i32_1 = arith.constant 0 : i32
    %c0_i32_2 = arith.constant 0 : i32
    return %c0_i32, %c0_i32_0, %c0_i32_1 : i32, i32, i32
  }
  func.func @transform_2(%arg0: i32, %arg1: i32, %arg2: memref<8xi32, #tpu.memory_space<smem>>) -> (i32, i32, i32) {
    %c0_i32 = arith.constant 0 : i32
    %c0_i32_0 = arith.constant 0 : i32
    %c0_i32_1 = arith.constant 0 : i32
    %c0_i32_2 = arith.constant 0 : i32
    return %c0_i32, %c0_i32_0, %c0_i32_1 : i32, i32, i32
  }
  func.func @transform_3(%arg0: i32, %arg1: i32, %arg2: memref<8xi32, #tpu.memory_space<smem>>) -> (i32, i32) {
    %c0_i32 = arith.constant 0 : i32
    %c0_i32_0 = arith.constant 0 : i32
    %c0_i32_1 = arith.constant 0 : i32
    return %c0_i32, %c0_i32_0 : i32, i32
  }
  func.func @transform_4(%arg0: i32, %arg1: i32, %arg2: memref<8xi32, #tpu.memory_space<smem>>) -> (i32, i32) {
    %c0_i32 = arith.constant 0 : i32
    %c0_i32_0 = arith.constant 0 : i32
    %c0_i32_1 = arith.constant 0 : i32
    return %c0_i32, %c0_i32_0 : i32, i32
  }
  func.func @transform_5(%arg0: i32, %arg1: i32, %arg2: memref<8xi32, #tpu.memory_space<smem>>) -> (i32, i32) {
    %c0_i32 = arith.constant 0 : i32
    %c0_i32_0 = arith.constant 0 : i32
    %c0_i32_1 = arith.constant 0 : i32
    return %c0_i32, %c0_i32_0 : i32, i32
  }
  func.func @transform_6(%arg0: i32, %arg1: i32, %arg2: memref<8xi32, #tpu.memory_space<smem>>) -> (i32, i32) {
    %c0_i32 = arith.constant 0 : i32
    %c0_i32_0 = arith.constant 0 : i32
    %c0_i32_1 = arith.constant 0 : i32
    return %c0_i32, %c0_i32_0 : i32, i32
  }
  func.func @transform_7(%arg0: i32, %arg1: i32, %arg2: memref<8xi32, #tpu.memory_space<smem>>) -> (i32, i32) {
    %c0_i32 = arith.constant 0 : i32
    %c0_i32_0 = arith.constant 0 : i32
    %c0_i32_1 = arith.constant 0 : i32
    return %c0_i32, %c0_i32_0 : i32, i32
  }
  func.func @transform_8(%arg0: i32, %arg1: i32, %arg2: memref<8xi32, #tpu.memory_space<smem>>) -> (i32, i32) {
    %c0_i32 = arith.constant 0 : i32
    %c0_i32_0 = arith.constant 0 : i32
    %c0_i32_1 = arith.constant 0 : i32
    return %c0_i32, %c0_i32_0 : i32, i32
  }
  func.func @transform_9(%arg0: i32, %arg1: i32, %arg2: memref<8xi32, #tpu.memory_space<smem>>) -> (i32, i32) {
    %c0_i32 = arith.constant 0 : i32
    %c0_i32_0 = arith.constant 0 : i32
    return %c0_i32, %arg1 : i32, i32
  }
  func.func @transform_10(%arg0: i32, %arg1: i32, %arg2: memref<8xi32, #tpu.memory_space<smem>>) -> (i32, i32) {
    %c0_i32 = arith.constant 0 : i32
    %c0_i32_0 = arith.constant 0 : i32
    return %c0_i32, %arg1 : i32, i32
  }
  func.func @transform_11(%arg0: i32, %arg1: i32, %arg2: memref<8xi32, #tpu.memory_space<smem>>) -> (i32, i32, i32) {
    %c0_i32 = arith.constant 0 : i32
    %c0_i32_0 = arith.constant 0 : i32
    return %arg0, %c0_i32, %arg1 : i32, i32, i32
  }
  func.func @transform_12(%arg0: i32, %arg1: i32, %arg2: memref<8xi32, #tpu.memory_space<smem>>) -> (i32, i32, i32) {
    %c0_i32 = arith.constant 0 : i32
    %c0_i32_0 = arith.constant 0 : i32
    %c0_i32_1 = arith.constant 0 : i32
    %c0_i32_2 = arith.constant 0 : i32
    return %c0_i32, %c0_i32_0, %c0_i32_1 : i32, i32, i32
  }
  func.func @transform_13(%arg0: i32, %arg1: i32, %arg2: memref<8xi32, #tpu.memory_space<smem>>) -> (i32, i32, i32) {
    %c0_i32 = arith.constant 0 : i32
    %c0_i32_0 = arith.constant 0 : i32
    %c0_i32_1 = arith.constant 0 : i32
    %c0_i32_2 = arith.constant 0 : i32
    return %c0_i32, %c0_i32_0, %c0_i32_1 : i32, i32, i32
  }
}

</mosaic_0001>

<llo_original>
// kernel: _decode_impl.1
$region0: #{_decode_impl.1}
  #allocation0 [shape = 'u32[]', space=smem, size = 0x4, offset = 0x4, fixed_abs, tag = 'smem constant byte address 0x4 - core index']
  #allocation1 [shape = 'u32[144,128]{1,0:T(1,128)}', space=vmem, size = 0x12000, scoped, tag = 'internal scratch']
  #allocation2 [shape = 'f32[8,16]{1,0:T(8,128)}', space=vmem, size = 0x1000, scoped, tag = 'scratch operand']
  #allocation3 [shape = 'bf16[8,32]{1,0:T(8,128)(2,1)}', space=vmem, size = 0x800, scoped, tag = 'scratch operand']
  #allocation4 [shape = 's32[1]{0}', space=sflag, size = 0x4, scoped, tag = 'scoped memory for _decode_impl.1']
  #allocation5 [shape = 'u8[512]{0}', space=smem, size = 0x200, scoped, tag = 'prefetched SMEM operand 0']
  %s0 = inlined_call_operand.vmem [shape: s32[8], index: 0, kind: input, shape index: {}]
  %s1 = inlined_call_operand.vmem [shape: f32[64,16], index: 1, kind: input, shape index: {}]
  %s2 = inlined_call_operand.hbm [shape: f32[3,8,32], index: 2, kind: input, shape index: {}, may-alias: {2,13}]
  %s3 = inlined_call_operand.hbm [shape: f32[3,8,32], index: 3, kind: input, shape index: {}, may-alias: {3,14}]
  %s4 = inlined_call_operand.vmem [shape: bf16[48,128], index: 4, kind: input, shape index: {}]
  %s5 = inlined_call_operand.vmem [shape: f32[1,128], index: 5, kind: input, shape index: {}]
  %s6 = inlined_call_operand.vmem [shape: bf16[64,128], index: 6, kind: input, shape index: {}]
  %s7 = inlined_call_operand.vmem [shape: f32[1,128], index: 7, kind: input, shape index: {}]
  %s8 = inlined_call_operand.vmem [shape: bf16[64,128], index: 8, kind: input, shape index: {}]
  %s9 = inlined_call_operand.vmem [shape: f32[1,128], index: 9, kind: input, shape index: {}]
  %s10 = inlined_call_operand.vmem [shape: bf16[32,128], index: 10, kind: input, shape index: {}]
  %s11 = inlined_call_operand.vmem [shape: f32[1,128], index: 11, kind: input, shape index: {}]
  %s12 = inlined_call_operand.hbm [shape: f32[1,8,128], index: 12, kind: output, shape index: {0}]
  %s13 = inlined_call_operand.hbm [shape: f32[3,8,32], index: 13, kind: output, shape index: {1}, may-alias: {2,13}]
  %s14 = inlined_call_operand.hbm [shape: f32[3,8,32], index: 14, kind: output, shape index: {2}, may-alias: {3,14}]
  %15 = xla_tuple %s12, %s13, %s14
  %s16 = sld [smem:[#allocation0]]
  $region86: #{_decode_impl.1} parent=0
    _
  %s18 = ssub.s32 1, %s16
  %s19 = scalar_select 0, %s18, %s16
  %s20 = sshll.u32 %s0, 4
  %s21 = int_to_ptr.vmem [resolvable:$true] %s20
  %23 = dma.vmem_to_smem %s21, 16, [#allocation5], [#allocation4]
  %24 = dma.done [#allocation4], 16
  %25 = sfence
  $region1: #{_decode_impl.1} parent=0
    #allocation6 [shape = 'u8[12288]{0}', space=vmem, size = 0x3000, scoped, tag = 'input window, operand 2, single buffered']
    #allocation7 [shape = 's32[1]{0}', space=sflag, size = 0x4, scoped, tag = 'scoped memory for _decode_impl.1']
    #allocation8 [shape = 's32[1]{0}', space=sflag, size = 0x4, scoped, tag = 'scoped memory for _decode_impl.1']
    #allocation9 [shape = 'u8[12288]{0}', space=vmem, size = 0x3000, scoped, tag = 'input window, operand 3, single buffered']
    #allocation10 [shape = 's32[1]{0}', space=sflag, size = 0x4, scoped, tag = 'scoped memory for _decode_impl.1']
    #allocation11 [shape = 'u8[4096]{0}', space=vmem, size = 0x1000, scoped, tag = 'output window, operand 0, single buffered']
    #allocation12 [shape = 'u8[12288]{0}', space=vmem, size = 0x3000, scoped, tag = 'output window, operand 1, single buffered']
    #allocation13 [shape = 's32[1]{0}', space=sflag, size = 0x4, scoped, tag = 'scoped memory for _decode_impl.1']
    #allocation14 [shape = 'u8[12288]{0}', space=vmem, size = 0x3000, scoped, tag = 'output window, operand 2, single buffered']
    %26 = vsyncpa [#allocation7], 0
    %27 = vsyncpa [#allocation10], 0
    %28 = vsyncpa [#allocation8], 0
    %29 = vsyncpa [#allocation13], 0
    // Predicated region
    $region2: #{_decode_impl.1} parent=1 // pred_check
      _
    $region3: #{_decode_impl.1} parent=1 // pred_check_branch
      %31 = sbr.rel (0) target = $region5
    $region4: #{_decode_impl.1} parent=1 // pred_region
      _
    $region5: #{_decode_impl.1} parent=1 // pred_fallthru
      _
    // Predicated region
    $region6: #{_decode_impl.1} parent=1 // pred_check
      _
    $region7: #{_decode_impl.1} parent=1 // pred_check_branch
      %33 = sbr.rel (0) target = $region9
    $region8: #{_decode_impl.1} parent=1 // pred_region
      %s35 = ssub.s32 384, 384
      %36 = vsyncadd [#allocation7], %s35
      %s37 = sshll.u32 [#allocation6], 4
      %s38 = int_to_ptr.vmem [resolvable:$true] %s37
      %43 = dma.hbm_to_vmem [thread:$0]  %s2, 384, %s38, [#allocation7], 128, 128, 8
    $region9: #{_decode_impl.1} parent=1 // pred_fallthru
      _
    // Predicated region
    $region10: #{_decode_impl.1} parent=1 // pred_check
      _
    $region11: #{_decode_impl.1} parent=1 // pred_check_branch
      %45 = sbr.rel (0) target = $region13
    $region12: #{_decode_impl.1} parent=1 // pred_region
      %s47 = ssub.s32 384, 384
      %48 = vsyncadd [#allocation10], %s47
      %s49 = sshll.u32 [#allocation9], 4
      %s50 = int_to_ptr.vmem [resolvable:$true] %s49
      %55 = dma.hbm_to_vmem [thread:$0]  %s3, 384, %s50, [#allocation10], 128, 128, 8
    $region13: #{_decode_impl.1} parent=1 // pred_fallthru
      _
    // Predicated region
    $region14: #{_decode_impl.1} parent=1 // pred_check
      _
    $region15: #{_decode_impl.1} parent=1 // pred_check_branch
      %57 = sbr.rel (0) target = $region17
    $region16: #{_decode_impl.1} parent=1 // pred_region
      _
    $region17: #{_decode_impl.1} parent=1 // pred_fallthru
      _
    // Predicated region
    $region18: #{_decode_impl.1} parent=1 // pred_check
      _
    $region19: #{_decode_impl.1} parent=1 // pred_check_branch
      %59 = sbr.rel (0) target = $region21
    $region20: #{_decode_impl.1} parent=1 // pred_region
      _
    $region21: #{_decode_impl.1} parent=1 // pred_fallthru
      _
    // Predicated region
    $region22: #{_decode_impl.1} parent=1 // pred_check
      _
    $region23: #{_decode_impl.1} parent=1 // pred_check_branch
      %61 = sbr.rel (0) target = $region25
    $region24: #{_decode_impl.1} parent=1 // pred_region
      _
    $region25: #{_decode_impl.1} parent=1 // pred_fallthru
      _
    // Predicated region
    $region26: #{_decode_impl.1} parent=1 // pred_check
      _
    $region27: #{_decode_impl.1} parent=1 // pred_check_branch
      %63 = sbr.rel (0) target = $region29
    $region28: #{_decode_impl.1} parent=1 // pred_region
      _
    $region29: #{_decode_impl.1} parent=1 // pred_fallthru
      _
    // Predicated region
    $region30: #{_decode_impl.1} parent=1 // pred_check
      _
    $region31: #{_decode_impl.1} parent=1 // pred_check_branch
      %65 = sbr.rel (0) target = $region33
    $region32: #{_decode_impl.1} parent=1 // pred_region
      _
    $region33: #{_decode_impl.1} parent=1 // pred_fallthru
      _
    // Predicated region
    $region34: #{_decode_impl.1} parent=1 // pred_check
      _
    $region35: #{_decode_impl.1} parent=1 // pred_check_branch
      %67 = sbr.rel (0) target = $region37
    $region36: #{_decode_impl.1} parent=1 // pred_region
      _
    $region37: #{_decode_impl.1} parent=1 // pred_fallthru
      _
    // Predicated region
    $region38: #{_decode_impl.1} parent=1 // pred_check
      _
    $region39: #{_decode_impl.1} parent=1 // pred_check_branch
      %69 = sbr.rel (0) target = $region41
    $region40: #{_decode_impl.1} parent=1 // pred_region
      _
    $region41: #{_decode_impl.1} parent=1 // pred_fallthru
      _
    // Predicated region
    $region42: #{_decode_impl.1} parent=1 // pred_check
      _
    $region43: #{_decode_impl.1} parent=1 // pred_check_branch
      %71 = sbr.rel (0) target = $region45
    $region44: #{_decode_impl.1} parent=1 // pred_region
      _
    $region45: #{_decode_impl.1} parent=1 // pred_fallthru
      _
    // Predicated region
    $region46: #{_decode_impl.1} parent=1 // pred_check
      _
    $region47: #{_decode_impl.1} parent=1 // pred_check_branch
      %73 = sbr.rel (0) target = $region49
    $region48: #{_decode_impl.1} parent=1 // pred_region
      %74 = dma.done [#allocation7], 384
    $region49: #{_decode_impl.1} parent=1 // pred_fallthru
      _
    // Predicated region
    $region50: #{_decode_impl.1} parent=1 // pred_check
      _
    $region51: #{_decode_impl.1} parent=1 // pred_check_branch
      %76 = sbr.rel (0) target = $region53
    $region52: #{_decode_impl.1} parent=1 // pred_region
      %77 = dma.done [#allocation10], 384
    $region53: #{_decode_impl.1} parent=1 // pred_fallthru
      _
    %p79 = scmp.eq.s32.totalorder 0, 0
    %p80 = scmp.eq.s32.totalorder 0, 0
    %p81 = pnand %p79, %p80
    %p82 = pneg %p81
    // Predicated region
    $region54: #{_decode_impl.1} parent=1 // pred_check
      _
    $region55: #{_decode_impl.1} parent=1 // pred_check_branch
      %84 = sbr.rel (%p81) target = $region57
    $region56: #{_decode_impl.1} parent=1 // pred_region
      %v85 = vld [vmem:[#allocation6] sm:$0xff]
      %v86 = vld [vmem:[#allocation6 + $0x8] sm:$0xff]
      %v87 = vld [vmem:[#allocation6 + $0x10] sm:$0xff]
      %vm88 = vcmask 261120
      %89 = vst.msk [vmem:[#allocation12] sm:$0xff] %vm88, %v85
      %90 = vst.msk [vmem:[#allocation12 + $0x8] sm:$0xff] %vm88, %v86
      %91 = vst.msk [vmem:[#allocation12 + $0x10] sm:$0xff] %vm88, %v87
      %v92 = vld [vmem:[#allocation9] sm:$0xff]
      %v93 = vld [vmem:[#allocation9 + $0x8] sm:$0xff]
      %v94 = vld [vmem:[#allocation9 + $0x10] sm:$0xff]
      %95 = vst.msk [vmem:[#allocation14] sm:$0xff] %vm88, %v92
      %96 = vst.msk [vmem:[#allocation14 + $0x8] sm:$0xff] %vm88, %v93
      %97 = vst.msk [vmem:[#allocation14 + $0x10] sm:$0xff] %vm88, %v94
    $region57: #{_decode_impl.1} parent=1 // pred_fallthru
      _
    // Predicated region
    $region58: #{_decode_impl.1} parent=1 // pred_check
      %p98 = pneg %p80
    $region59: #{_decode_impl.1} parent=1 // pred_check_branch
      %100 = sbr.rel (%p98) target = $region61
    $region60: #{_decode_impl.1} parent=1 // pred_region
      %s101 = smul.u32 0, 8
      %s102 = sld [smem:[#allocation5 + %s101]]
      %s103 = scalar_lea.vmem %s1, %s102
      %v104 = vld [vmem:[%s103] sm:$0x1]
      %vm105 = vcmask 122880
      %106 = vst.msk [vmem:[#allocation2] sm:$0x1] %vm105, %v104
      %s107 = sadd.s32 %s101, 1
      %s108 = sld [smem:[#allocation5 + %s107]]
      %s109 = scalar_lea.vmem %s1, %s108
      %v110 = vld [vmem:[%s109] sm:$0x1]
      %111 = vst.msk [vmem:[#allocation2 + $0x1] sm:$0x1] %vm105, %v110
      %s112 = sadd.s32 %s101, 2
      %s113 = sld [smem:[#allocation5 + %s112]]
      %s114 = scalar_lea.vmem %s1, %s113
      %v115 = vld [vmem:[%s114] sm:$0x1]
      %116 = vst.msk [vmem:[#allocation2 + $0x2] sm:$0x1] %vm105, %v115
      %s117 = sadd.s32 %s101, 3
      %s118 = sld [smem:[#allocation5 + %s117]]
      %s119 = scalar_lea.vmem %s1, %s118
      %v120 = vld [vmem:[%s119] sm:$0x1]
      %121 = vst.msk [vmem:[#allocation2 + $0x3] sm:$0x1] %vm105, %v120
      %s122 = sadd.s32 %s101, 4
      %s123 = sld [smem:[#allocation5 + %s122]]
      %s124 = scalar_lea.vmem %s1, %s123
      %v125 = vld [vmem:[%s124] sm:$0x1]
      %126 = vst.msk [vmem:[#allocation2 + $0x4] sm:$0x1] %vm105, %v125
      %s127 = sadd.s32 %s101, 5
      %s128 = sld [smem:[#allocation5 + %s127]]
      %s129 = scalar_lea.vmem %s1, %s128
      %v130 = vld [vmem:[%s129] sm:$0x1]
      %131 = vst.msk [vmem:[#allocation2 + $0x5] sm:$0x1] %vm105, %v130
      %s132 = sadd.s32 %s101, 6
      %s133 = sld [smem:[#allocation5 + %s132]]
      %s134 = scalar_lea.vmem %s1, %s133
      %v135 = vld [vmem:[%s134] sm:$0x1]
      %136 = vst.msk [vmem:[#allocation2 + $0x6] sm:$0x1] %vm105, %v135
      %s137 = sadd.s32 %s101, 7
      %s138 = sld [smem:[#allocation5 + %s137]]
      %s139 = scalar_lea.vmem %s1, %s138
      %v140 = vld [vmem:[%s139] sm:$0x1]
      %141 = vst.msk [vmem:[#allocation2 + $0x7] sm:$0x1] %vm105, %v140
      %v142 = vld [vmem:[#allocation2] sm:$0xff]
      %v143 = vld [vmem:[#allocation12] sm:$0xff]
      %v144 = vld [vmem:[#allocation14] sm:$0xff]
      %146 = vrot.lane.b32.xlu0 %v143, 16
      %v147 = vpop.permute.xlu0 %146
      %vm149 = vcmask 130048
      %v150 = vsel %vm149, %v142, %v147
      %v151 = vpack.c.bf16 %v150, %v150
      %v152 = vld [vmem:[%s4] sm:$0xf]
      %v153 = vld [vmem:[%s4 + $0x4] sm:$0xf]
      %v154 = vld [vmem:[%s4 + $0x8] sm:$0xf]
      %v155 = vld [vmem:[%s4 + $0xc] sm:$0xf]
      %v156 = vld [vmem:[%s4 + $0x10] sm:$0xf]
      %v157 = vld [vmem:[%s4 + $0x14] sm:$0xf]
      %v158 = vld [vmem:[%s5] sm:$0x1]
      %v160 = vlaneseq
      %v161 = vshrl.u32 %v160, 7
      %v162 = vsub.s32 0, %v161
      %v163 = vrot.slane %v158, %v162
      %v171 = vunpack.c.l.b16 %v152
      %v172 = vunpack.c.l.b16 %v153
      %v173 = vunpack.c.l.b16 %v154
      %v174 = vunpack.c.l.b16 %v155
      %v175 = vunpack.c.l.b16 %v156
      %v176 = vunpack.c.l.b16 %v157
      %v177 = vpack.c.b16 %v172, %v171
      %v178 = vpack.c.b16 %v174, %v173
      %v179 = vpack.c.b16 %v176, %v175
      %vm183 = vcmask 392192
      %v185 = vsel %vm183, %v151, 0
      %187 = vmatprep.subr.bf16.mxu0 0
      %188 = vmatpush1.bf16.msra.mxu0 0
      %189 = vmatprep.subr.bf16.mxu0 0
      %190 = vmatpush1.bf16.msra.mxu0 0
      %191 = vmatprep.subr.bf16.mxu0 0
      %192 = vmatpush1.bf16.msra.mxu0 0
      %193 = vmatprep.subr.bf16.mxu0 0
      %194 = vmatpush1.bf16.msra.mxu0 0
      %195 = vmatprep.subr.bf16.mxu0 0
      %196 = vmatpush1.bf16.msra.mxu0 0
      %197 = vmatprep.subr.bf16.mxu0 0
      %198 = vmatpush1.bf16.msra.mxu0 %v179
      %199 = vmatprep.subr.bf16.mxu0 0
      %200 = vmatpush1.bf16.msra.mxu0 %v178
      %201 = vmatprep.subr.bf16.mxu0 0
      %202 = vmatpush1.bf16.msra.mxu0 %v177
      %203 = vmatprep.subr.bf16.mxu0 0
      %204 = vmatpush2.bf16.msra.mxu0 0
      %205 = vmatprep.subr.bf16.mxu0 0
      %206 = vmatpush2.bf16.msra.mxu0 0
      %207 = vmatprep.subr.bf16.mxu0 0
      %208 = vmatpush2.bf16.msra.mxu0 0
      %209 = vmatprep.subr.bf16.mxu0 0
      %210 = vmatpush2.bf16.msra.mxu0 0
      %211 = vmatprep.subr.bf16.mxu0 0
      %212 = vmatpush2.bf16.msra.mxu0 0
      %213 = vmatprep.subr.bf16.mxu0 0
      %214 = vmatpush2.bf16.msra.mxu0 0
      %215 = vmatprep.subr.bf16.mxu0 0
      %216 = vmatpush2.bf16.msra.mxu0 0
      %217 = vmatprep.subr.bf16.mxu0 0
      %218 = vmatpush2.bf16.msra.mxu0 0
      %219 = vmatprep.mubr.bf16.mxu0 0
      %220 = vmatmul.mubr.bf16.gmra.mxu0 %v185
      %v221 = vpop.f32.mrf.mxu0
      %v222 = vadd.f32 %v163, %v221
      %v223 = vpop.f32.mrf.mxu0
      %v224 = vpop.f32.mrf.mxu0
      %v225 = vpop.f32.mrf.mxu0
      %226 = vdwg.mxu0
      %v227 = vxor.u32 %v222, 2147483648
      %v228 = vmul.f32 %v227, 1.442695
      %v229 = vpow.pop %v228
      %v230 = vadd.f32 %v229, 1.0
      %v231 = vrcp.pop %v230
      %v232 = vmul.f32 1.0, %v231
      %v233 = vtanh.pop %v222
      %235 = vrot.lane.b32.xlu0 %v144, 32
      %v236 = vpop.permute.xlu0 %235
      %v238 = vmul.f32 %v232, %v236
      %240 = vrot.lane.b32.xlu0 %v233, 64
      %v241 = vpop.permute.xlu0 %240
      %v243 = vmul.f32 %v232, %v241
      %245 = vrot.lane.b32.xlu0 %v243, 32
      %v246 = vpop.permute.xlu0 %245
      %v248 = vadd.f32 %v238, %v246
      %v249 = vtanh.pop %v248
      %251 = vrot.lane.b32.xlu0 %v249, 64
      %v252 = vpop.permute.xlu0 %251
      %v254 = vmul.f32 %v232, %v252
      %256 = vrot.lane.b32.xlu0 %v254, 32
      %v257 = vpop.permute.xlu0 %256
      %vm259 = vcmask 261120
      %260 = vst.msk [vmem:[#allocation12] sm:$0xff] %vm259, %v257
      %262 = vrot.lane.b32.xlu0 %v248, 96
      %v263 = vpop.permute.xlu0 %262
      %265 = vst.msk [vmem:[#allocation14] sm:$0xff] %vm259, %v263
      %s266 = scalar_lea.vmem [#allocation12], 8
      %v267 = vld [vmem:[%s266] sm:$0xff]
      %s268 = scalar_lea.vmem [#allocation14], 8
      %v269 = vld [vmem:[%s268] sm:$0xff]
      %271 = vrot.lane.b32.xlu0 %v267, 32
      %v272 = vpop.permute.xlu0 %271
      %v274 = vsel %vm259, %v257, %v272
      %v275 = vpack.c.bf16 %v274, %v274
      %v276 = vld [vmem:[%s6] sm:$0xf]
      %v277 = vld [vmem:[%s6 + $0x4] sm:$0xf]
      %v278 = vld [vmem:[%s6 + $0x8] sm:$0xf]
      %v279 = vld [vmem:[%s6 + $0xc] sm:$0xf]
      %v280 = vld [vmem:[%s6 + $0x10] sm:$0xf]
      %v281 = vld [vmem:[%s6 + $0x14] sm:$0xf]
      %v282 = vld [vmem:[%s6 + $0x18] sm:$0xf]
      %v283 = vld [vmem:[%s6 + $0x1c] sm:$0xf]
      %v284 = vld [vmem:[%s7] sm:$0x1]
      %v286 = vlaneseq
      %v287 = vshrl.u32 %v286, 7
      %v288 = vsub.s32 0, %v287
      %v289 = vrot.slane %v284, %v288
      %v299 = vunpack.c.l.b16 %v276
      %v300 = vunpack.c.l.b16 %v277
      %v301 = vunpack.c.l.b16 %v278
      %v302 = vunpack.c.l.b16 %v279
      %v303 = vunpack.c.l.b16 %v280
      %v304 = vunpack.c.l.b16 %v281
      %v305 = vunpack.c.l.b16 %v282
      %v306 = vunpack.c.l.b16 %v283
      %v307 = vpack.c.b16 %v300, %v299
      %v308 = vpack.c.b16 %v302, %v301
      %v309 = vpack.c.b16 %v304, %v303
      %v310 = vpack.c.b16 %v306, %v305
      %vm315 = vcmask 523264
      %v317 = vsel %vm315, %v275, 0
      %319 = vmatprep.subr.bf16.mxu0 0
      %320 = vmatpush1.bf16.msra.mxu0 0
      %321 = vmatprep.subr.bf16.mxu0 0
      %322 = vmatpush1.bf16.msra.mxu0 0
      %323 = vmatprep.subr.bf16.mxu0 0
      %324 = vmatpush1.bf16.msra.mxu0 0
      %325 = vmatprep.subr.bf16.mxu0 0
      %326 = vmatpush1.bf16.msra.mxu0 0
      %327 = vmatprep.subr.bf16.mxu0 0
      %328 = vmatpush1.bf16.msra.mxu0 %v310
      %329 = vmatprep.subr.bf16.mxu0 0
      %330 = vmatpush1.bf16.msra.mxu0 %v309
      %331 = vmatprep.subr.bf16.mxu0 0
      %332 = vmatpush1.bf16.msra.mxu0 %v308
      %333 = vmatprep.subr.bf16.mxu0 0
      %334 = vmatpush1.bf16.msra.mxu0 %v307
      %335 = vmatprep.subr.bf16.mxu0 0
      %336 = vmatpush2.bf16.msra.mxu0 0
      %337 = vmatprep.subr.bf16.mxu0 0
      %338 = vmatpush2.bf16.msra.mxu0 0
      %339 = vmatprep.subr.bf16.mxu0 0
      %340 = vmatpush2.bf16.msra.mxu0 0
      %341 = vmatprep.subr.bf16.mxu0 0
      %342 = vmatpush2.bf16.msra.mxu0 0
      %343 = vmatprep.subr.bf16.mxu0 0
      %344 = vmatpush2.bf16.msra.mxu0 0
      %345 = vmatprep.subr.bf16.mxu0 0
      %346 = vmatpush2.bf16.msra.mxu0 0
      %347 = vmatprep.subr.bf16.mxu0 0
      %348 = vmatpush2.bf16.msra.mxu0 0
      %349 = vmatprep.subr.bf16.mxu0 0
      %350 = vmatpush2.bf16.msra.mxu0 0
      %351 = vmatprep.mubr.bf16.mxu0 0
      %352 = vmatmul.mubr.bf16.gmra.mxu0 %v317
      %v353 = vpop.f32.mrf.mxu0
      %v354 = vadd.f32 %v289, %v353
      %v355 = vpop.f32.mrf.mxu0
      %v356 = vpop.f32.mrf.mxu0
      %v357 = vpop.f32.mrf.mxu0
      %358 = vdwg.mxu0
      %v359 = vxor.u32 %v354, 2147483648
      %v360 = vmul.f32 %v359, 1.442695
      %v361 = vpow.pop %v360
      %v362 = vadd.f32 %v361, 1.0
      %v363 = vrcp.pop %v362
      %v364 = vmul.f32 1.0, %v363
      %v365 = vtanh.pop %v354
      %367 = vrot.lane.b32.xlu0 %v269, 32
      %v368 = vpop.permute.xlu0 %367
      %v370 = vmul.f32 %v364, %v368
      %372 = vrot.lane.b32.xlu0 %v365, 64
      %v373 = vpop.permute.xlu0 %372
      %v375 = vmul.f32 %v364, %v373
      %377 = vrot.lane.b32.xlu0 %v375, 32
      %v378 = vpop.permute.xlu0 %377
      %v380 = vadd.f32 %v370, %v378
      %v381 = vtanh.pop %v380
      %383 = vrot.lane.b32.xlu0 %v381, 64
      %v384 = vpop.permute.xlu0 %383
      %v386 = vmul.f32 %v364, %v384
      %388 = vrot.lane.b32.xlu0 %v386, 32
      %v389 = vpop.permute.xlu0 %388
      %391 = vst.msk [vmem:[%s266] sm:$0xff] %vm259, %v389
      %393 = vrot.lane.b32.xlu0 %v380, 96
      %v394 = vpop.permute.xlu0 %393
      %396 = vst.msk [vmem:[%s268] sm:$0xff] %vm259, %v394
      %s397 = scalar_lea.vmem [#allocation12], 16
      %v398 = vld [vmem:[%s397] sm:$0xff]
      %s399 = scalar_lea.vmem [#allocation14], 16
      %v400 = vld [vmem:[%s399] sm:$0xff]
      %402 = vrot.lane.b32.xlu0 %v398, 32
      %v403 = vpop.permute.xlu0 %402
      %v405 = vsel %vm259, %v389, %v403
      %v406 = vpack.c.bf16 %v405, %v405
      %v407 = vld [vmem:[%s8] sm:$0xf]
      %v408 = vld [vmem:[%s8 + $0x4] sm:$0xf]
      %v409 = vld [vmem:[%s8 + $0x8] sm:$0xf]
      %v410 = vld [vmem:[%s8 + $0xc] sm:$0xf]
      %v411 = vld [vmem:[%s8 + $0x10] sm:$0xf]
      %v412 = vld [vmem:[%s8 + $0x14] sm:$0xf]
      %v413 = vld [vmem:[%s8 + $0x18] sm:$0xf]
      %v414 = vld [vmem:[%s8 + $0x1c] sm:$0xf]
      %v415 = vld [vmem:[%s9] sm:$0x1]
      %v417 = vlaneseq
      %v418 = vshrl.u32 %v417, 7
      %v419 = vsub.s32 0, %v418
      %v420 = vrot.slane %v415, %v419
      %v430 = vunpack.c.l.b16 %v407
      %v431 = vunpack.c.l.b16 %v408
      %v432 = vunpack.c.l.b16 %v409
      %v433 = vunpack.c.l.b16 %v410
      %v434 = vunpack.c.l.b16 %v411
      %v435 = vunpack.c.l.b16 %v412
      %v436 = vunpack.c.l.b16 %v413
      %v437 = vunpack.c.l.b16 %v414
      %v438 = vpack.c.b16 %v431, %v430
      %v439 = vpack.c.b16 %v433, %v432
      %v440 = vpack.c.b16 %v435, %v434
      %v441 = vpack.c.b16 %v437, %v436
      %v447 = vsel %vm315, %v406, 0
      %449 = vmatprep.subr.bf16.mxu0 0
      %450 = vmatpush1.bf16.msra.mxu0 0
      %451 = vmatprep.subr.bf16.mxu0 0
      %452 = vmatpush1.bf16.msra.mxu0 0
      %453 = vmatprep.subr.bf16.mxu0 0
      %454 = vmatpush1.bf16.msra.mxu0 0
      %455 = vmatprep.subr.bf16.mxu0 0
      %456 = vmatpush1.bf16.msra.mxu0 0
      %457 = vmatprep.subr.bf16.mxu0 0
      %458 = vmatpush1.bf16.msra.mxu0 %v441
      %459 = vmatprep.subr.bf16.mxu0 0
      %460 = vmatpush1.bf16.msra.mxu0 %v440
      %461 = vmatprep.subr.bf16.mxu0 0
      %462 = vmatpush1.bf16.msra.mxu0 %v439
      %463 = vmatprep.subr.bf16.mxu0 0
      %464 = vmatpush1.bf16.msra.mxu0 %v438
      %465 = vmatprep.subr.bf16.mxu0 0
      %466 = vmatpush2.bf16.msra.mxu0 0
      %467 = vmatprep.subr.bf16.mxu0 0
      %468 = vmatpush2.bf16.msra.mxu0 0
      %469 = vmatprep.subr.bf16.mxu0 0
      %470 = vmatpush2.bf16.msra.mxu0 0
      %471 = vmatprep.subr.bf16.mxu0 0
      %472 = vmatpush2.bf16.msra.mxu0 0
      %473 = vmatprep.subr.bf16.mxu0 0
      %474 = vmatpush2.bf16.msra.mxu0 0
      %475 = vmatprep.subr.bf16.mxu0 0
      %476 = vmatpush2.bf16.msra.mxu0 0
      %477 = vmatprep.subr.bf16.mxu0 0
      %478 = vmatpush2.bf16.msra.mxu0 0
      %479 = vmatprep.subr.bf16.mxu0 0
      %480 = vmatpush2.bf16.msra.mxu0 0
      %481 = vmatprep.mubr.bf16.mxu0 0
      %482 = vmatmul.mubr.bf16.gmra.mxu0 %v447
      %v483 = vpop.f32.mrf.mxu0
      %v484 = vadd.f32 %v420, %v483
      %v485 = vpop.f32.mrf.mxu0
      %v486 = vpop.f32.mrf.mxu0
      %v487 = vpop.f32.mrf.mxu0
      %488 = vdwg.mxu0
      %v489 = vxor.u32 %v484, 2147483648
      %v490 = vmul.f32 %v489, 1.442695
      %v491 = vpow.pop %v490
      %v492 = vadd.f32 %v491, 1.0
      %v493 = vrcp.pop %v492
      %v494 = vmul.f32 1.0, %v493
      %v495 = vtanh.pop %v484
      %497 = vrot.lane.b32.xlu0 %v400, 32
      %v498 = vpop.permute.xlu0 %497
      %v500 = vmul.f32 %v494, %v498
      %502 = vrot.lane.b32.xlu0 %v495, 64
      %v503 = vpop.permute.xlu0 %502
      %v505 = vmul.f32 %v494, %v503
      %507 = vrot.lane.b32.xlu0 %v505, 32
      %v508 = vpop.permute.xlu0 %507
      %v510 = vadd.f32 %v500, %v508
      %v511 = vtanh.pop %v510
      %513 = vrot.lane.b32.xlu0 %v511, 64
      %v514 = vpop.permute.xlu0 %513
      %v516 = vmul.f32 %v494, %v514
      %518 = vrot.lane.b32.xlu0 %v516, 32
      %v519 = vpop.permute.xlu0 %518
      %521 = vst.msk [vmem:[%s397] sm:$0xff] %vm259, %v519
      %523 = vrot.lane.b32.xlu0 %v510, 96
      %v524 = vpop.permute.xlu0 %523
      %526 = vst.msk [vmem:[%s399] sm:$0xff] %vm259, %v524
      %v527 = vpack.c.bf16 %v516, %v516
      %v529 = vunpack.c.l.b16 %v527
      %v530 = vpack.c.b16 %v529, %v529
      %531 = vrot.lane.b32.xlu0 %v530, 32
      %v532 = vpop.permute.xlu0 %531
      %vm534 = vcmask 257024
      %535 = vst.msk [vmem:[#allocation3] sm:$0xf] %vm534, %v532
    $region61: #{_decode_impl.1} parent=1 // pred_fallthru
      _
    %v536 = vld [vmem:[#allocation3] sm:$0xf]
    %v537 = vld [vmem:[%s10] sm:$0xf]
    %v538 = vld [vmem:[%s10 + $0x4] sm:$0xf]
    %v539 = vld [vmem:[%s10 + $0x8] sm:$0xf]
    %v540 = vld [vmem:[%s10 + $0xc] sm:$0xf]
    %v541 = vld [vmem:[%s11] sm:$0x1]
    %v543 = vlaneseq
    %v544 = vshrl.u32 %v543, 7
    %v545 = vsub.s32 0, %v544
    %v546 = vrot.slane %v541, %v545
    %v552 = vunpack.c.l.b16 %v537
    %v553 = vunpack.c.l.b16 %v538
    %v554 = vunpack.c.l.b16 %v539
    %v555 = vunpack.c.l.b16 %v540
    %v556 = vpack.c.b16 %v553, %v552
    %v557 = vpack.c.b16 %v555, %v554
    %vm560 = vcmask 261120
    %v562 = vsel %vm560, %v536, 0
    %564 = vmatprep.subr.bf16.mxu0 0
    %565 = vmatpush1.bf16.msra.mxu0 0
    %566 = vmatprep.subr.bf16.mxu0 0
    %567 = vmatpush1.bf16.msra.mxu0 0
    %568 = vmatprep.subr.bf16.mxu0 0
    %569 = vmatpush1.bf16.msra.mxu0 0
    %570 = vmatprep.subr.bf16.mxu0 0
    %571 = vmatpush1.bf16.msra.mxu0 0
    %572 = vmatprep.subr.bf16.mxu0 0
    %573 = vmatpush1.bf16.msra.mxu0 0
    %574 = vmatprep.subr.bf16.mxu0 0
    %575 = vmatpush1.bf16.msra.mxu0 0
    %576 = vmatprep.subr.bf16.mxu0 0
    %577 = vmatpush1.bf16.msra.mxu0 %v557
    %578 = vmatprep.subr.bf16.mxu0 0
    %579 = vmatpush1.bf16.msra.mxu0 %v556
    %580 = vmatprep.subr.bf16.mxu0 0
    %581 = vmatpush2.bf16.msra.mxu0 0
    %582 = vmatprep.subr.bf16.mxu0 0
    %583 = vmatpush2.bf16.msra.mxu0 0
    %584 = vmatprep.subr.bf16.mxu0 0
    %585 = vmatpush2.bf16.msra.mxu0 0
    %586 = vmatprep.subr.bf16.mxu0 0
    %587 = vmatpush2.bf16.msra.mxu0 0
    %588 = vmatprep.subr.bf16.mxu0 0
    %589 = vmatpush2.bf16.msra.mxu0 0
    %590 = vmatprep.subr.bf16.mxu0 0
    %591 = vmatpush2.bf16.msra.mxu0 0
    %592 = vmatprep.subr.bf16.mxu0 0
    %593 = vmatpush2.bf16.msra.mxu0 0
    %594 = vmatprep.subr.bf16.mxu0 0
    %595 = vmatpush2.bf16.msra.mxu0 0
    %596 = vmatprep.mubr.bf16.mxu0 0
    %597 = vmatmul.mubr.bf16.gmra.mxu0 %v562
    %v598 = vpop.f32.mrf.mxu0
    %v599 = vadd.f32 %v546, %v598
    %v600 = vpop.f32.mrf.mxu0
    %v601 = vpop.f32.mrf.mxu0
    %v602 = vpop.f32.mrf.mxu0
    %603 = vdwg.mxu0
    %604 = vst [vmem:[#allocation11] sm:$0xff] %v599
    // Predicated region
    $region62: #{_decode_impl.1} parent=1 // pred_check
      _
    $region63: #{_decode_impl.1} parent=1 // pred_check_branch
      %606 = sbr.rel (0) target = $region65
    $region64: #{_decode_impl.1} parent=1 // pred_region
      %s608 = ssub.s32 128, 128
      %609 = vsyncadd [#allocation8], %s608
      %s611 = sshll.u32 [#allocation11], 4
      %s612 = int_to_ptr.vmem [resolvable:$true] %s611
      %614 = dma.vmem_to_hbm [thread:$0]  %s612, 128, %s12, [#allocation8]
    $region65: #{_decode_impl.1} parent=1 // pred_fallthru
      _
    // Predicated region
    $region66: #{_decode_impl.1} parent=1 // pred_check
      _
    $region67: #{_decode_impl.1} parent=1 // pred_check_branch
      %616 = sbr.rel (0) target = $region69
    $region68: #{_decode_impl.1} parent=1 // pred_region
      %s618 = ssub.s32 384, 384
      %619 = vsyncadd [#allocation13], %s618
      %s620 = sshll.u32 [#allocation12], 4
      %s621 = int_to_ptr.vmem [resolvable:$true] %s620
      %626 = dma.vmem_to_hbm [thread:$0]  %s621, 384, %s13, [#allocation13], 128, 128, 8
    $region69: #{_decode_impl.1} parent=1 // pred_fallthru
      _
    // Predicated region
    $region70: #{_decode_impl.1} parent=1 // pred_check
      _
    $region71: #{_decode_impl.1} parent=1 // pred_check_branch
      %628 = sbr.rel (0) target = $region73
    $region72: #{_decode_impl.1} parent=1 // pred_region
      %s630 = ssub.s32 384, 384
      %631 = vsyncadd [#allocation13], %s630
      %s632 = sshll.u32 [#allocation14], 4
      %s633 = int_to_ptr.vmem [resolvable:$true] %s632
      %638 = dma.vmem_to_hbm [thread:$0]  %s633, 384, %s14, [#allocation13], 128, 128, 8
    $region73: #{_decode_impl.1} parent=1 // pred_fallthru
      _
    // Predicated region
    $region74: #{_decode_impl.1} parent=1 // pred_check
      _
    $region75: #{_decode_impl.1} parent=1 // pred_check_branch
      %640 = sbr.rel (0) target = $region77
    $region76: #{_decode_impl.1} parent=1 // pred_region
      %641 = dma.done [#allocation8], 128
    $region77: #{_decode_impl.1} parent=1 // pred_fallthru
      _
    // Predicated region
    $region78: #{_decode_impl.1} parent=1 // pred_check
      _
    $region79: #{_decode_impl.1} parent=1 // pred_check_branch
      %643 = sbr.rel (0) target = $region81
    $region80: #{_decode_impl.1} parent=1 // pred_region
      %644 = dma.done [#allocation13], 384
    $region81: #{_decode_impl.1} parent=1 // pred_fallthru
      _
    // Predicated region
    $region82: #{_decode_impl.1} parent=1 // pred_check
      _
    $region83: #{_decode_impl.1} parent=1 // pred_check_branch
      %646 = sbr.rel (0) target = $region85
    $region84: #{_decode_impl.1} parent=1 // pred_region
      %647 = dma.done [#allocation13], 384
    $region85: #{_decode_impl.1} parent=1 // pred_fallthru
      _
    %648 = vsyncpa [#allocation7], 1
    %649 = vsyncpa [#allocation10], 1
    %650 = vsyncpa [#allocation8], 1
    %651 = vsyncpa [#allocation13], 1

// kernel: _decode_impl.1
$region0: #{_decode_impl.1}
  #allocation0 [shape = 'u32[]', space=smem, size = 0x4, offset = 0x4, fixed_abs, tag = 'smem constant byte address 0x4 - core index']
  #allocation1 [shape = 'u32[144,128]{1,0:T(1,128)}', space=vmem, size = 0x12000, scoped, tag = 'internal scratch']
  #allocation2 [shape = 'f32[8,16]{1,0:T(8,128)}', space=vmem, size = 0x1000, scoped, tag = 'scratch operand']
  #allocation3 [shape = 'bf16[8,32]{1,0:T(8,128)(2,1)}', space=vmem, size = 0x800, scoped, tag = 'scratch operand']
  #allocation4 [shape = 's32[1]{0}', space=sflag, size = 0x4, scoped, tag = 'scoped memory for _decode_impl.1']
  #allocation5 [shape = 'u8[512]{0}', space=smem, size = 0x200, scoped, tag = 'prefetched SMEM operand 0']
  %s0 = inlined_call_operand.vmem [shape: s32[8], index: 0, kind: input, shape index: {}]
  %s1 = inlined_call_operand.vmem [shape: f32[64,16], index: 1, kind: input, shape index: {}]
  %s2 = inlined_call_operand.hbm [shape: f32[3,8,32], index: 2, kind: input, shape index: {}, may-alias: {2,13}]
  %s3 = inlined_call_operand.hbm [shape: f32[3,8,32], index: 3, kind: input, shape index: {}, may-alias: {3,14}]
  %s4 = inlined_call_operand.vmem [shape: bf16[48,128], index: 4, kind: input, shape index: {}]
  %s5 = inlined_call_operand.vmem [shape: f32[1,128], index: 5, kind: input, shape index: {}]
  %s6 = inlined_call_operand.vmem [shape: bf16[64,128], index: 6, kind: input, shape index: {}]
  %s7 = inlined_call_operand.vmem [shape: f32[1,128], index: 7, kind: input, shape index: {}]
  %s8 = inlined_call_operand.vmem [shape: bf16[64,128], index: 8, kind: input, shape index: {}]
  %s9 = inlined_call_operand.vmem [shape: f32[1,128], index: 9, kind: input, shape index: {}]
  %s10 = inlined_call_operand.vmem [shape: bf16[32,128], index: 10, kind: input, shape index: {}]
  %s11 = inlined_call_operand.vmem [shape: f32[1,128], index: 11, kind: input, shape index: {}]
  %s12 = inlined_call_operand.hbm [shape: f32[1,8,128], index: 12, kind: output, shape index: {0}]
  %s13 = inlined_call_operand.hbm [shape: f32[3,8,32], index: 13, kind: output, shape index: {1}, may-alias: {2,13}]
  %s14 = inlined_call_operand.hbm [shape: f32[3,8,32], index: 14, kind: output, shape index: {2}, may-alias: {3,14}]
  %15 = xla_tuple %s12, %s13, %s14
  %s16 = sld [smem:[#allocation0]]
  $region86: #{_decode_impl.1} parent=0
    _
  %s18 = ssub.s32 1, %s16
  %s19 = scalar_select 0, %s18, %s16
  %s20 = sshll.u32 %s0, 4
  %s21 = int_to_ptr.vmem [resolvable:$true] %s20
  %23 = dma.vmem_to_smem %s21, 16, [#allocation5], [#allocation4]
  %24 = dma.done [#allocation4], 16
  %25 = sfence
  $region1: #{_decode_impl.1} parent=0
    #allocation6 [shape = 'u8[12288]{0}', space=vmem, size = 0x3000, scoped, tag = 'input window, operand 2, single buffered']
    #allocation7 [shape = 's32[1]{0}', space=sflag, size = 0x4, scoped, tag = 'scoped memory for _decode_impl.1']
    #allocation8 [shape = 's32[1]{0}', space=sflag, size = 0x4, scoped, tag = 'scoped memory for _decode_impl.1']
    #allocation9 [shape = 'u8[12288]{0}', space=vmem, size = 0x3000, scoped, tag = 'input window, operand 3, single buffered']
    #allocation10 [shape = 's32[1]{0}', space=sflag, size = 0x4, scoped, tag = 'scoped memory for _decode_impl.1']
    #allocation11 [shape = 'u8[4096]{0}', space=vmem, size = 0x1000, scoped, tag = 'output window, operand 0, single buffered']
    #allocation12 [shape = 'u8[12288]{0}', space=vmem, size = 0x3000, scoped, tag = 'output window, operand 1, single buffered']
    #allocation13 [shape = 's32[1]{0}', space=sflag, size = 0x4, scoped, tag = 'scoped memory for _decode_impl.1']
    #allocation14 [shape = 'u8[12288]{0}', space=vmem, size = 0x3000, scoped, tag = 'output window, operand 2, single buffered']
    %26 = vsyncpa [#allocation7], 0
    %27 = vsyncpa [#allocation10], 0
    %28 = vsyncpa [#allocation8], 0
    %29 = vsyncpa [#allocation13], 0
    // Predicated region
    $region2: #{_decode_impl.1} parent=1 // pred_check
      _
    $region3: #{_decode_impl.1} parent=1 // pred_check_branch
      %31 = sbr.rel (0) target = $region5
    $region4: #{_decode_impl.1} parent=1 // pred_region
      _
    $region5: #{_decode_impl.1} parent=1 // pred_fallthru
      _
    // Predicated region
    $region6: #{_decode_impl.1} parent=1 // pred_check
      _
    $region7: #{_decode_impl.1} parent=1 // pred_check_branch
      %33 = sbr.rel (0) target = $region9
    $region8: #{_decode_impl.1} parent=1 // pred_region
      %s35 = ssub.s32 384, 384
      %36 = vsyncadd [#allocation7], %s35
      %s37 = sshll.u32 [#allocation6], 4
      %s38 = int_to_ptr.vmem [resolvable:$true] %s37
      %43 = dma.hbm_to_vmem [thread:$0]  %s2, 384, %s38, [#allocation7], 128, 128, 8
    $region9: #{_decode_impl.1} parent=1 // pred_fallthru
      _
    // Predicated region
    $region10: #{_decode_impl.1} parent=1 // pred_check
      _
    $region11: #{_decode_impl.1} parent=1 // pred_check_branch
      %45 = sbr.rel (0) target = $region13
    $region12: #{_decode_impl.1} parent=1 // pred_region
      %s47 = ssub.s32 384, 384
      %48 = vsyncadd [#allocation10], %s47
      %s49 = sshll.u32 [#allocation9], 4
      %s50 = int_to_ptr.vmem [resolvable:$true] %s49
      %55 = dma.hbm_to_vmem [thread:$0]  %s3, 384, %s50, [#allocation10], 128, 128, 8
    $region13: #{_decode_impl.1} parent=1 // pred_fallthru
      _
    // Predicated region
    $region14: #{_decode_impl.1} parent=1 // pred_check
      _
    $region15: #{_decode_impl.1} parent=1 // pred_check_branch
      %57 = sbr.rel (0) target = $region17
    $region16: #{_decode_impl.1} parent=1 // pred_region
      _
    $region17: #{_decode_impl.1} parent=1 // pred_fallthru
      _
    // Predicated region
    $region18: #{_decode_impl.1} parent=1 // pred_check
      _
    $region19: #{_decode_impl.1} parent=1 // pred_check_branch
      %59 = sbr.rel (0) target = $region21
    $region20: #{_decode_impl.1} parent=1 // pred_region
      _
    $region21: #{_decode_impl.1} parent=1 // pred_fallthru
      _
    // Predicated region
    $region22: #{_decode_impl.1} parent=1 // pred_check
      _
    $region23: #{_decode_impl.1} parent=1 // pred_check_branch
      %61 = sbr.rel (0) target = $region25
    $region24: #{_decode_impl.1} parent=1 // pred_region
      _
    $region25: #{_decode_impl.1} parent=1 // pred_fallthru
      _
    // Predicated region
    $region26: #{_decode_impl.1} parent=1 // pred_check
      _
    $region27: #{_decode_impl.1} parent=1 // pred_check_branch
      %63 = sbr.rel (0) target = $region29
    $region28: #{_decode_impl.1} parent=1 // pred_region
      _
    $region29: #{_decode_impl.1} parent=1 // pred_fallthru
      _
    // Predicated region
    $region30: #{_decode_impl.1} parent=1 // pred_check
      _
    $region31: #{_decode_impl.1} parent=1 // pred_check_branch
      %65 = sbr.rel (0) target = $region33
    $region32: #{_decode_impl.1} parent=1 // pred_region
      _
    $region33: #{_decode_impl.1} parent=1 // pred_fallthru
      _
    // Predicated region
    $region34: #{_decode_impl.1} parent=1 // pred_check
      _
    $region35: #{_decode_impl.1} parent=1 // pred_check_branch
      %67 = sbr.rel (0) target = $region37
    $region36: #{_decode_impl.1} parent=1 // pred_region
      _
    $region37: #{_decode_impl.1} parent=1 // pred_fallthru
      _
    // Predicated region
    $region38: #{_decode_impl.1} parent=1 // pred_check
      _
    $region39: #{_decode_impl.1} parent=1 // pred_check_branch
      %69 = sbr.rel (0) target = $region41
    $region40: #{_decode_impl.1} parent=1 // pred_region
      _
    $region41: #{_decode_impl.1} parent=1 // pred_fallthru
      _
    // Predicated region
    $region42: #{_decode_impl.1} parent=1 // pred_check
      _
    $region43: #{_decode_impl.1} parent=1 // pred_check_branch
      %71 = sbr.rel (0) target = $region45
    $region44: #{_decode_impl.1} parent=1 // pred_region
      _
    $region45: #{_decode_impl.1} parent=1 // pred_fallthru
      _
    // Predicated region
    $region46: #{_decode_impl.1} parent=1 // pred_check
      _
    $region47: #{_decode_impl.1} parent=1 // pred_check_branch
      %73 = sbr.rel (0) target = $region49
    $region48: #{_decode_impl.1} parent=1 // pred_region
      %74 = dma.done [#allocation7], 384
    $region49: #{_decode_impl.1} parent=1 // pred_fallthru
      _
    // Predicated region
    $region50: #{_decode_impl.1} parent=1 // pred_check
      _
    $region51: #{_decode_impl.1} parent=1 // pred_check_branch
      %76 = sbr.rel (0) target = $region53
    $region52: #{_decode_impl.1} parent=1 // pred_region
      %77 = dma.done [#allocation10], 384
    $region53: #{_decode_impl.1} parent=1 // pred_fallthru
      _
    %p79 = scmp.eq.s32.totalorder 0, 0
    %p80 = scmp.eq.s32.totalorder 0, 0
    %p81 = pnand %p79, %p80
    %p82 = pneg %p81
    // Predicated region
    $region54: #{_decode_impl.1} parent=1 // pred_check
      _
    $region55: #{_decode_impl.1} parent=1 // pred_check_branch
      %84 = sbr.rel (%p81) target = $region57
    $region56: #{_decode_impl.1} parent=1 // pred_region
      %v85 = vld [vmem:[#allocation6] sm:$0xff]
      %v86 = vld [vmem:[#allocation6 + $0x8] sm:$0xff]
      %v87 = vld [vmem:[#allocation6 + $0x10] sm:$0xff]
      %vm88 = vcmask 261120
      %89 = vst.msk [vmem:[#allocation12] sm:$0xff] %vm88, %v85
      %90 = vst.msk [vmem:[#allocation12 + $0x8] sm:$0xff] %vm88, %v86
      %91 = vst.msk [vmem:[#allocation12 + $0x10] sm:$0xff] %vm88, %v87
      %v92 = vld [vmem:[#allocation9] sm:$0xff]
      %v93 = vld [vmem:[#allocation9 + $0x8] sm:$0xff]
      %v94 = vld [vmem:[#allocation9 + $0x10] sm:$0xff]
      %95 = vst.msk [vmem:[#allocation14] sm:$0xff] %vm88, %v92
      %96 = vst.msk [vmem:[#allocation14 + $0x8] sm:$0xff] %vm88, %v93
      %97 = vst.msk [vmem:[#allocation14 + $0x10] sm:$0xff] %vm88, %v94
    $region57: #{_decode_impl.1} parent=1 // pred_fallthru
      _
    // Predicated region
    $region58: #{_decode_impl.1} parent=1 // pred_check
      %p98 = pneg %p80
    $region59: #{_decode_impl.1} parent=1 // pred_check_branch
      %100 = sbr.rel (%p98) target = $region61
    $region60: #{_decode_impl.1} parent=1 // pred_region
      %s101 = smul.u32 0, 8
      %s102 = sld [smem:[#allocation5 + %s101]]
      %s103 = scalar_lea.vmem %s1, %s102
      %v104 = vld [vmem:[%s103] sm:$0x1]
      %vm105 = vcmask 122880
      %106 = vst.msk [vmem:[#allocation2] sm:$0x1] %vm105, %v104
      %s107 = sadd.s32 %s101, 1
      %s108 = sld [smem:[#allocation5 + %s107]]
      %s109 = scalar_lea.vmem %s1, %s108
      %v110 = vld [vmem:[%s109] sm:$0x1]
      %111 = vst.msk [vmem:[#allocation2 + $0x1] sm:$0x1] %vm105, %v110
      %s112 = sadd.s32 %s101, 2
      %s113 = sld [smem:[#allocation5 + %s112]]
      %s114 = scalar_lea.vmem %s1, %s113
      %v115 = vld [vmem:[%s114] sm:$0x1]
      %116 = vst.msk [vmem:[#allocation2 + $0x2] sm:$0x1] %vm105, %v115
      %s117 = sadd.s32 %s101, 3
      %s118 = sld [smem:[#allocation5 + %s117]]
      %s119 = scalar_lea.vmem %s1, %s118
      %v120 = vld [vmem:[%s119] sm:$0x1]
      %121 = vst.msk [vmem:[#allocation2 + $0x3] sm:$0x1] %vm105, %v120
      %s122 = sadd.s32 %s101, 4
      %s123 = sld [smem:[#allocation5 + %s122]]
      %s124 = scalar_lea.vmem %s1, %s123
      %v125 = vld [vmem:[%s124] sm:$0x1]
      %126 = vst.msk [vmem:[#allocation2 + $0x4] sm:$0x1] %vm105, %v125
      %s127 = sadd.s32 %s101, 5
      %s128 = sld [smem:[#allocation5 + %s127]]
      %s129 = scalar_lea.vmem %s1, %s128
      %v130 = vld [vmem:[%s129] sm:$0x1]
      %131 = vst.msk [vmem:[#allocation2 + $0x5] sm:$0x1] %vm105, %v130
      %s132 = sadd.s32 %s101, 6
      %s133 = sld [smem:[#allocation5 + %s132]]
      %s134 = scalar_lea.vmem %s1, %s133
      %v135 = vld [vmem:[%s134] sm:$0x1]
      %136 = vst.msk [vmem:[#allocation2 + $0x6] sm:$0x1] %vm105, %v135
      %s137 = sadd.s32 %s101, 7
      %s138 = sld [smem:[#allocation5 + %s137]]
      %s139 = scalar_lea.vmem %s1, %s138
      %v140 = vld [vmem:[%s139] sm:$0x1]
      %141 = vst.msk [vmem:[#allocation2 + $0x7] sm:$0x1] %vm105, %v140
      %v142 = vld [vmem:[#allocation2] sm:$0xff]
      %v143 = vld [vmem:[#allocation12] sm:$0xff]
      %v144 = vld [vmem:[#allocation14] sm:$0xff]
      %146 = vrot.lane.b32.xlu0 %v143, 16
      %v147 = vpop.permute.xlu0 %146
      %vm149 = vcmask 130048
      %v150 = vsel %vm149, %v142, %v147
      %v151 = vpack.c.bf16 %v150, %v150
      %v152 = vld [vmem:[%s4] sm:$0xf]
      %v153 = vld [vmem:[%s4 + $0x4] sm:$0xf]
      %v154 = vld [vmem:[%s4 + $0x8] sm:$0xf]
      %v155 = vld [vmem:[%s4 + $0xc] sm:$0xf]
      %v156 = vld [vmem:[%s4 + $0x10] sm:$0xf]
      %v157 = vld [vmem:[%s4 + $0x14] sm:$0xf]
      %v158 = vld [vmem:[%s5] sm:$0x1]
      %v160 = vlaneseq
      %v161 = vshrl.u32 %v160, 7
      %v162 = vsub.s32 0, %v161
      %v163 = vrot.slane %v158, %v162
      %v171 = vunpack.c.l.b16 %v152
      %v172 = vunpack.c.l.b16 %v153
      %v173 = vunpack.c.l.b16 %v154
      %v174 = vunpack.c.l.b16 %v155
      %v175 = vunpack.c.l.b16 %v156
      %v176 = vunpack.c.l.b16 %v157
      %v177 = vpack.c.b16 %v172, %v171
      %v178 = vpack.c.b16 %v174, %v173
      %v179 = vpack.c.b16 %v176, %v175
      %vm183 = vcmask 392192
      %v185 = vsel %vm183, %v151, 0
      %187 = vmatprep.subr.bf16.mxu0 0
      %188 = vmatpush1.bf16.msra.mxu0 0
      %189 = vmatprep.subr.bf16.mxu0 0
      %190 = vmatpush1.bf16.msra.mxu0 0
      %191 = vmatprep.subr.bf16.mxu0 0
      %192 = vmatpush1.bf16.msra.mxu0 0
      %193 = vmatprep.subr.bf16.mxu0 0
      %194 = vmatpush1.bf16.msra.mxu0 0
      %195 = vmatprep.subr.bf16.mxu0 0
      %196 = vmatpush1.bf16.msra.mxu0 0
      %197 = vmatprep.subr.bf16.mxu0 0
      %198 = vmatpush1.bf16.msra.mxu0 %v179
      %199 = vmatprep.subr.bf16.mxu0 0
      %200 = vmatpush1.bf16.msra.mxu0 %v178
      %201 = vmatprep.subr.bf16.mxu0 0
      %202 = vmatpush1.bf16.msra.mxu0 %v177
      %203 = vmatprep.subr.bf16.mxu0 0
      %204 = vmatpush2.bf16.msra.mxu0 0
      %205 = vmatprep.subr.bf16.mxu0 0
      %206 = vmatpush2.bf16.msra.mxu0 0
      %207 = vmatprep.subr.bf16.mxu0 0
      %208 = vmatpush2.bf16.msra.mxu0 0
      %209 = vmatprep.subr.bf16.mxu0 0
      %210 = vmatpush2.bf16.msra.mxu0 0
      %211 = vmatprep.subr.bf16.mxu0 0
      %212 = vmatpush2.bf16.msra.mxu0 0
      %213 = vmatprep.subr.bf16.mxu0 0
      %214 = vmatpush2.bf16.msra.mxu0 0
      %215 = vmatprep.subr.bf16.mxu0 0
      %216 = vmatpush2.bf16.msra.mxu0 0
      %217 = vmatprep.subr.bf16.mxu0 0
      %218 = vmatpush2.bf16.msra.mxu0 0
      %219 = vmatprep.mubr.bf16.mxu0 0
      %220 = vmatmul.mubr.bf16.gmra.mxu0 %v185
      %v221 = vpop.f32.mrf.mxu0
      %v222 = vadd.f32 %v163, %v221
      %v223 = vpop.f32.mrf.mxu0
      %v224 = vpop.f32.mrf.mxu0
      %v225 = vpop.f32.mrf.mxu0
      %226 = vdwg.mxu0
      %v227 = vxor.u32 %v222, 2147483648
      %v228 = vmul.f32 %v227, 1.442695
      %v229 = vpow.pop %v228
      %v230 = vadd.f32 %v229, 1.0
      %v231 = vrcp.pop %v230
      %v232 = vmul.f32 1.0, %v231
      %v233 = vtanh.pop %v222
      %235 = vrot.lane.b32.xlu0 %v144, 32
      %v236 = vpop.permute.xlu0 %235
      %v238 = vmul.f32 %v232, %v236
      %240 = vrot.lane.b32.xlu0 %v233, 64
      %v241 = vpop.permute.xlu0 %240
      %v243 = vmul.f32 %v232, %v241
      %245 = vrot.lane.b32.xlu0 %v243, 32
      %v246 = vpop.permute.xlu0 %245
      %v248 = vadd.f32 %v238, %v246
      %v249 = vtanh.pop %v248
      %251 = vrot.lane.b32.xlu0 %v249, 64
      %v252 = vpop.permute.xlu0 %251
      %v254 = vmul.f32 %v232, %v252
      %256 = vrot.lane.b32.xlu0 %v254, 32
      %v257 = vpop.permute.xlu0 %256
      %vm259 = vcmask 261120
      %260 = vst.msk [vmem:[#allocation12] sm:$0xff] %vm259, %v257
      %262 = vrot.lane.b32.xlu0 %v248, 96
      %v263 = vpop.permute.xlu0 %262
      %265 = vst.msk [vmem:[#allocation14] sm:$0xff] %vm259, %v263
      %s266 = scalar_lea.vmem [#allocation12], 8
      %v267 = vld [vmem:[%s266] sm:$0xff]
      %s268 = scalar_lea.vmem [#allocation14], 8
      %v269 = vld [vmem:[%s268] sm:$0xff]
      %271 = vrot.lane.b32.xlu0 %v267, 32
      %v272 = vpop.permute.xlu0 %271
      %v274 = vsel %vm259, %v257, %v272
      %v275 = vpack.c.bf16 %v274, %v274
      %v276 = vld [vmem:[%s6] sm:$0xf]
      %v277 = vld [vmem:[%s6 + $0x4] sm:$0xf]
      %v278 = vld [vmem:[%s6 + $0x8] sm:$0xf]
      %v279 = vld [vmem:[%s6 + $0xc] sm:$0xf]
      %v280 = vld [vmem:[%s6 + $0x10] sm:$0xf]
      %v281 = vld [vmem:[%s6 + $0x14] sm:$0xf]
      %v282 = vld [vmem:[%s6 + $0x18] sm:$0xf]
      %v283 = vld [vmem:[%s6 + $0x1c] sm:$0xf]
      %v284 = vld [vmem:[%s7] sm:$0x1]
      %v286 = vlaneseq
      %v287 = vshrl.u32 %v286, 7
      %v288 = vsub.s32 0, %v287
      %v289 = vrot.slane %v284, %v288
      %v299 = vunpack.c.l.b16 %v276
      %v300 = vunpack.c.l.b16 %v277
      %v301 = vunpack.c.l.b16 %v278
      %v302 = vunpack.c.l.b16 %v279
      %v303 = vunpack.c.l.b16 %v280
      %v304 = vunpack.c.l.b16 %v281
      %v305 = vunpack.c.l.b16 %v282
      %v306 = vunpack.c.l.b16 %v283
      %v307 = vpack.c.b16 %v300, %v299
      %v308 = vpack.c.b16 %v302, %v301
      %v309 = vpack.c.b16 %v304, %v303
      %v310 = vpack.c.b16 %v306, %v305
      %vm315 = vcmask 523264
      %v317 = vsel %vm315, %v275, 0
      %319 = vmatprep.subr.bf16.mxu0 0
      %320 = vmatpush1.bf16.msra.mxu0 0
      %321 = vmatprep.subr.bf16.mxu0 0
      %322 = vmatpush1.bf16.msra.mxu0 0
      %323 = vmatprep.subr.bf16.mxu0 0
      %324 = vmatpush1.bf16.msra.mxu0 0
      %325 = vmatprep.subr.bf16.mxu0 0
      %326 = vmatpush1.bf16.msra.mxu0 0
      %327 = vmatprep.subr.bf16.mxu0 0
      %328 = vmatpush1.bf16.msra.mxu0 %v310
      %329 = vmatprep.subr.bf16.mxu0 0
      %330 = vmatpush1.bf16.msra.mxu0 %v309
      %331 = vmatprep.subr.bf16.mxu0 0
      %332 = vmatpush1.bf16.msra.mxu0 %v308
      %333 = vmatprep.subr.bf16.mxu0 0
      %334 = vmatpush1.bf16.msra.mxu0 %v307
      %335 = vmatprep.subr.bf16.mxu0 0
      %336 = vmatpush2.bf16.msra.mxu0 0
      %337 = vmatprep.subr.bf16.mxu0 0
      %338 = vmatpush2.bf16.msra.mxu0 0
      %339 = vmatprep.subr.bf16.mxu0 0
      %340 = vmatpush2.bf16.msra.mxu0 0
      %341 = vmatprep.subr.bf16.mxu0 0
      %342 = vmatpush2.bf16.msra.mxu0 0
      %343 = vmatprep.subr.bf16.mxu0 0
      %344 = vmatpush2.bf16.msra.mxu0 0
      %345 = vmatprep.subr.bf16.mxu0 0
      %346 = vmatpush2.bf16.msra.mxu0 0
      %347 = vmatprep.subr.bf16.mxu0 0
      %348 = vmatpush2.bf16.msra.mxu0 0
      %349 = vmatprep.subr.bf16.mxu0 0
      %350 = vmatpush2.bf16.msra.mxu0 0
      %351 = vmatprep.mubr.bf16.mxu0 0
      %352 = vmatmul.mubr.bf16.gmra.mxu0 %v317
      %v353 = vpop.f32.mrf.mxu0
      %v354 = vadd.f32 %v289, %v353
      %v355 = vpop.f32.mrf.mxu0
      %v356 = vpop.f32.mrf.mxu0
      %v357 = vpop.f32.mrf.mxu0
      %358 = vdwg.mxu0
      %v359 = vxor.u32 %v354, 2147483648
      %v360 = vmul.f32 %v359, 1.442695
      %v361 = vpow.pop %v360
      %v362 = vadd.f32 %v361, 1.0
      %v363 = vrcp.pop %v362
      %v364 = vmul.f32 1.0, %v363
      %v365 = vtanh.pop %v354
      %367 = vrot.lane.b32.xlu0 %v269, 32
      %v368 = vpop.permute.xlu0 %367
      %v370 = vmul.f32 %v364, %v368
      %372 = vrot.lane.b32.xlu0 %v365, 64
      %v373 = vpop.permute.xlu0 %372
      %v375 = vmul.f32 %v364, %v373
      %377 = vrot.lane.b32.xlu0 %v375, 32
      %v378 = vpop.permute.xlu0 %377
      %v380 = vadd.f32 %v370, %v378
      %v381 = vtanh.pop %v380
      %383 = vrot.lane.b32.xlu0 %v381, 64
      %v384 = vpop.permute.xlu0 %383
      %v386 = vmul.f32 %v364, %v384
      %388 = vrot.lane.b32.xlu0 %v386, 32
      %v389 = vpop.permute.xlu0 %388
      %391 = vst.msk [vmem:[%s266] sm:$0xff] %vm259, %v389
      %393 = vrot.lane.b32.xlu0 %v380, 96
      %v394 = vpop.permute.xlu0 %393
      %396 = vst.msk [vmem:[%s268] sm:$0xff] %vm259, %v394
      %s397 = scalar_lea.vmem [#allocation12], 16
      %v398 = vld [vmem:[%s397] sm:$0xff]
      %s399 = scalar_lea.vmem [#allocation14], 16
      %v400 = vld [vmem:[%s399] sm:$0xff]
      %402 = vrot.lane.b32.xlu0 %v398, 32
      %v403 = vpop.permute.xlu0 %402
      %v405 = vsel %vm259, %v389, %v403
      %v406 = vpack.c.bf16 %v405, %v405
      %v407 = vld [vmem:[%s8] sm:$0xf]
      %v408 = vld [vmem:[%s8 + $0x4] sm:$0xf]
      %v409 = vld [vmem:[%s8 + $0x8] sm:$0xf]
      %v410 = vld [vmem:[%s8 + $0xc] sm:$0xf]
      %v411 = vld [vmem:[%s8 + $0x10] sm:$0xf]
      %v412 = vld [vmem:[%s8 + $0x14] sm:$0xf]
      %v413 = vld [vmem:[%s8 + $0x18] sm:$0xf]
      %v414 = vld [vmem:[%s8 + $0x1c] sm:$0xf]
      %v415 = vld [vmem:[%s9] sm:$0x1]
      %v417 = vlaneseq
      %v418 = vshrl.u32 %v417, 7
      %v419 = vsub.s32 0, %v418
      %v420 = vrot.slane %v415, %v419
      %v430 = vunpack.c.l.b16 %v407
      %v431 = vunpack.c.l.b16 %v408
      %v432 = vunpack.c.l.b16 %v409
      %v433 = vunpack.c.l.b16 %v410
      %v434 = vunpack.c.l.b16 %v411
      %v435 = vunpack.c.l.b16 %v412
      %v436 = vunpack.c.l.b16 %v413
      %v437 = vunpack.c.l.b16 %v414
      %v438 = vpack.c.b16 %v431, %v430
      %v439 = vpack.c.b16 %v433, %v432
      %v440 = vpack.c.b16 %v435, %v434
      %v441 = vpack.c.b16 %v437, %v436
      %v447 = vsel %vm315, %v406, 0
      %449 = vmatprep.subr.bf16.mxu0 0
      %450 = vmatpush1.bf16.msra.mxu0 0
      %451 = vmatprep.subr.bf16.mxu0 0
      %452 = vmatpush1.bf16.msra.mxu0 0
      %453 = vmatprep.subr.bf16.mxu0 0
      %454 = vmatpush1.bf16.msra.mxu0 0
      %455 = vmatprep.subr.bf16.mxu0 0
      %456 = vmatpush1.bf16.msra.mxu0 0
      %457 = vmatprep.subr.bf16.mxu0 0
      %458 = vmatpush1.bf16.msra.mxu0 %v441
      %459 = vmatprep.subr.bf16.mxu0 0
      %460 = vmatpush1.bf16.msra.mxu0 %v440
      %461 = vmatprep.subr.bf16.mxu0 0
      %462 = vmatpush1.bf16.msra.mxu0 %v439
      %463 = vmatprep.subr.bf16.mxu0 0
      %464 = vmatpush1.bf16.msra.mxu0 %v438
      %465 = vmatprep.subr.bf16.mxu0 0
      %466 = vmatpush2.bf16.msra.mxu0 0
      %467 = vmatprep.subr.bf16.mxu0 0
      %468 = vmatpush2.bf16.msra.mxu0 0
      %469 = vmatprep.subr.bf16.mxu0 0
      %470 = vmatpush2.bf16.msra.mxu0 0
      %471 = vmatprep.subr.bf16.mxu0 0
      %472 = vmatpush2.bf16.msra.mxu0 0
      %473 = vmatprep.subr.bf16.mxu0 0
      %474 = vmatpush2.bf16.msra.mxu0 0
      %475 = vmatprep.subr.bf16.mxu0 0
      %476 = vmatpush2.bf16.msra.mxu0 0
      %477 = vmatprep.subr.bf16.mxu0 0
      %478 = vmatpush2.bf16.msra.mxu0 0
      %479 = vmatprep.subr.bf16.mxu0 0
      %480 = vmatpush2.bf16.msra.mxu0 0
      %481 = vmatprep.mubr.bf16.mxu0 0
      %482 = vmatmul.mubr.bf16.gmra.mxu0 %v447
      %v483 = vpop.f32.mrf.mxu0
      %v484 = vadd.f32 %v420, %v483
      %v485 = vpop.f32.mrf.mxu0
      %v486 = vpop.f32.mrf.mxu0
      %v487 = vpop.f32.mrf.mxu0
      %488 = vdwg.mxu0
      %v489 = vxor.u32 %v484, 2147483648
      %v490 = vmul.f32 %v489, 1.442695
      %v491 = vpow.pop %v490
      %v492 = vadd.f32 %v491, 1.0
      %v493 = vrcp.pop %v492
      %v494 = vmul.f32 1.0, %v493
      %v495 = vtanh.pop %v484
      %497 = vrot.lane.b32.xlu0 %v400, 32
      %v498 = vpop.permute.xlu0 %497
      %v500 = vmul.f32 %v494, %v498
      %502 = vrot.lane.b32.xlu0 %v495, 64
      %v503 = vpop.permute.xlu0 %502
      %v505 = vmul.f32 %v494, %v503
      %507 = vrot.lane.b32.xlu0 %v505, 32
      %v508 = vpop.permute.xlu0 %507
      %v510 = vadd.f32 %v500, %v508
      %v511 = vtanh.pop %v510
      %513 = vrot.lane.b32.xlu0 %v511, 64
      %v514 = vpop.permute.xlu0 %513
      %v516 = vmul.f32 %v494, %v514
      %518 = vrot.lane.b32.xlu0 %v516, 32
      %v519 = vpop.permute.xlu0 %518
      %521 = vst.msk [vmem:[%s397] sm:$0xff] %vm259, %v519
      %523 = vrot.lane.b32.xlu0 %v510, 96
      %v524 = vpop.permute.xlu0 %523
      %526 = vst.msk [vmem:[%s399] sm:$0xff] %vm259, %v524
      %v527 = vpack.c.bf16 %v516, %v516
      %v529 = vunpack.c.l.b16 %v527
      %v530 = vpack.c.b16 %v529, %v529
      %531 = vrot.lane.b32.xlu0 %v530, 32
      %v532 = vpop.permute.xlu0 %531
      %vm534 = vcmask 257024
      %535 = vst.msk [vmem:[#allocation3] sm:$0xf] %vm534, %v532
    $region61: #{_decode_impl.1} parent=1 // pred_fallthru
      _
    %v536 = vld [vmem:[#allocation3] sm:$0xf]
    %v537 = vld [vmem:[%s10] sm:$0xf]
    %v538 = vld [vmem:[%s10 + $0x4] sm:$0xf]
    %v539 = vld [vmem:[%s10 + $0x8] sm:$0xf]
    %v540 = vld [vmem:[%s10 + $0xc] sm:$0xf]
    %v541 = vld [vmem:[%s11] sm:$0x1]
    %v543 = vlaneseq
    %v544 = vshrl.u32 %v543, 7
    %v545 = vsub.s32 0, %v544
    %v546 = vrot.slane %v541, %v545
    %v552 = vunpack.c.l.b16 %v537
    %v553 = vunpack.c.l.b16 %v538
    %v554 = vunpack.c.l.b16 %v539
    %v555 = vunpack.c.l.b16 %v540
    %v556 = vpack.c.b16 %v553, %v552
    %v557 = vpack.c.b16 %v555, %v554
    %vm560 = vcmask 261120
    %v562 = vsel %vm560, %v536, 0
    %564 = vmatprep.subr.bf16.mxu0 0
    %565 = vmatpush1.bf16.msra.mxu0 0
    %566 = vmatprep.subr.bf16.mxu0 0
    %567 = vmatpush1.bf16.msra.mxu0 0
    %568 = vmatprep.subr.bf16.mxu0 0
    %569 = vmatpush1.bf16.msra.mxu0 0
    %570 = vmatprep.subr.bf16.mxu0 0
    %571 = vmatpush1.bf16.msra.mxu0 0
    %572 = vmatprep.subr.bf16.mxu0 0
    %573 = vmatpush1.bf16.msra.mxu0 0
    %574 = vmatprep.subr.bf16.mxu0 0
    %575 = vmatpush1.bf16.msra.mxu0 0
    %576 = vmatprep.subr.bf16.mxu0 0
    %577 = vmatpush1.bf16.msra.mxu0 %v557
    %578 = vmatprep.subr.bf16.mxu0 0
    %579 = vmatpush1.bf16.msra.mxu0 %v556
    %580 = vmatprep.subr.bf16.mxu0 0
    %581 = vmatpush2.bf16.msra.mxu0 0
    %582 = vmatprep.subr.bf16.mxu0 0
    %583 = vmatpush2.bf16.msra.mxu0 0
    %584 = vmatprep.subr.bf16.mxu0 0
    %585 = vmatpush2.bf16.msra.mxu0 0
    %586 = vmatprep.subr.bf16.mxu0 0
    %587 = vmatpush2.bf16.msra.mxu0 0
    %588 = vmatprep.subr.bf16.mxu0 0
    %589 = vmatpush2.bf16.msra.mxu0 0
    %590 = vmatprep.subr.bf16.mxu0 0
    %591 = vmatpush2.bf16.msra.mxu0 0
    %592 = vmatprep.subr.bf16.mxu0 0
    %593 = vmatpush2.bf16.msra.mxu0 0
    %594 = vmatprep.subr.bf16.mxu0 0
    %595 = vmatpush2.bf16.msra.mxu0 0
    %596 = vmatprep.mubr.bf16.mxu0 0
    %597 = vmatmul.mubr.bf16.gmra.mxu0 %v562
    %v598 = vpop.f32.mrf.mxu0
    %v599 = vadd.f32 %v546, %v598
    %v600 = vpop.f32.mrf.mxu0
    %v601 = vpop.f32.mrf.mxu0
    %v602 = vpop.f32.mrf.mxu0
    %603 = vdwg.mxu0
    %604 = vst [vmem:[#allocation11] sm:$0xff] %v599
    // Predicated region
    $region62: #{_decode_impl.1} parent=1 // pred_check
      _
    $region63: #{_decode_impl.1} parent=1 // pred_check_branch
      %606 = sbr.rel (0) target = $region65
    $region64: #{_decode_impl.1} parent=1 // pred_region
      %s608 = ssub.s32 128, 128
      %609 = vsyncadd [#allocation8], %s608
      %s611 = sshll.u32 [#allocation11], 4
      %s612 = int_to_ptr.vmem [resolvable:$true] %s611
      %614 = dma.vmem_to_hbm [thread:$0]  %s612, 128, %s12, [#allocation8]
    $region65: #{_decode_impl.1} parent=1 // pred_fallthru
      _
    // Predicated region
    $region66: #{_decode_impl.1} parent=1 // pred_check
      _
    $region67: #{_decode_impl.1} parent=1 // pred_check_branch
      %616 = sbr.rel (0) target = $region69
    $region68: #{_decode_impl.1} parent=1 // pred_region
      %s618 = ssub.s32 384, 384
      %619 = vsyncadd [#allocation13], %s618
      %s620 = sshll.u32 [#allocation12], 4
      %s621 = int_to_ptr.vmem [resolvable:$true] %s620
      %626 = dma.vmem_to_hbm [thread:$0]  %s621, 384, %s13, [#allocation13], 128, 128, 8
    $region69: #{_decode_impl.1} parent=1 // pred_fallthru
      _
    // Predicated region
    $region70: #{_decode_impl.1} parent=1 // pred_check
      _
    $region71: #{_decode_impl.1} parent=1 // pred_check_branch
      %628 = sbr.rel (0) target = $region73
    $region72: #{_decode_impl.1} parent=1 // pred_region
      %s630 = ssub.s32 384, 384
      %631 = vsyncadd [#allocation13], %s630
      %s632 = sshll.u32 [#allocation14], 4
      %s633 = int_to_ptr.vmem [resolvable:$true] %s632
      %638 = dma.vmem_to_hbm [thread:$0]  %s633, 384, %s14, [#allocation13], 128, 128, 8
    $region73: #{_decode_impl.1} parent=1 // pred_fallthru
      _
    // Predicated region
    $region74: #{_decode_impl.1} parent=1 // pred_check
      _
    $region75: #{_decode_impl.1} parent=1 // pred_check_branch
      %640 = sbr.rel (0) target = $region77
    $region76: #{_decode_impl.1} parent=1 // pred_region
      %641 = dma.done [#allocation8], 128
    $region77: #{_decode_impl.1} parent=1 // pred_fallthru
      _
    // Predicated region
    $region78: #{_decode_impl.1} parent=1 // pred_check
      _
    $region79: #{_decode_impl.1} parent=1 // pred_check_branch
      %643 = sbr.rel (0) target = $region81
    $region80: #{_decode_impl.1} parent=1 // pred_region
      %644 = dma.done [#allocation13], 384
    $region81: #{_decode_impl.1} parent=1 // pred_fallthru
      _
    // Predicated region
    $region82: #{_decode_impl.1} parent=1 // pred_check
      _
    $region83: #{_decode_impl.1} parent=1 // pred_check_branch
      %646 = sbr.rel (0) target = $region85
    $region84: #{_decode_impl.1} parent=1 // pred_region
      %647 = dma.done [#allocation13], 384
    $region85: #{_decode_impl.1} parent=1 // pred_fallthru
      _
    %648 = vsyncpa [#allocation7], 1
    %649 = vsyncpa [#allocation10], 1
    %650 = vsyncpa [#allocation8], 1
    %651 = vsyncpa [#allocation13], 1

</llo_original>
